<compile_context>
chip_gen: v6e
topology: v6e:2x2x1
jax: 0.10.0
libtpu: 0.0.40
codegen_flags: <defaults>
</compile_context>

<pallas_src>
import functools

import numpy as np
import jax
import jax.numpy as jnp
from jax import lax
from jax.experimental import pallas as pl
from jax.experimental.pallas import tpu as pltpu


HEADS = 4          # GATConv heads (concat=False -> mean over heads)
H_FEATS = 100      # GATConv-1 logical hidden width
H_PAD = 128        # lane-aligned padded width used inside the kernel
OUT_FEATS = 128    # GATConv-2 output width (already lane aligned)
HIDDEN = 64        # per-slot MLP hidden width
NEG_INF = -1e30


# ------------------------------ fused kernel body ------------------------------
def _gat_block(x_bf, neg_mask, eye_h, w_ref, attc_ref, b_ref, *, heads, fdim,
               apply_elu):
    """One GATConv: linear, per-head masked-softmax attention, mean over heads."""
    n = x_bf.shape[0]
    # Linear transform for all heads at once (bf16 operands, f32 accumulation).
    xw = jnp.dot(x_bf, w_ref[...], preferred_element_type=jnp.float32)   # [N, H*fdim]
    xw_bf = xw.astype(jnp.bfloat16)
    # Attention logits for all heads (att vectors folded into weights host-side).
    alphas = jnp.dot(x_bf, attc_ref[...], preferred_element_type=jnp.float32)  # [N, 2H]
    # src logits in ROW orientation [H, N]: one tiny trans-B matmul per layer
    # (replaces the previous 8 serialized K=1 outer products on the MXU).
    a_src_rows = lax.dot_general(eye_h, alphas[:, :heads],
                                 (((1,), (1,)), ((), ())),
                                 preferred_element_type=jnp.float32)     # [H, N]
    acc = jnp.zeros((n, fdim), jnp.float32)
    for h in range(heads):                        # static unroll (heads == 4)
        # s[i, j] = a_dst[i] + a_src[j]  (pure VPU broadcast-add)
        s = alphas[:, heads + h:heads + h + 1] + a_src_rows[h:h + 1, :]  # [N, N] f32
        s = jnp.where(s > 0, s, 0.2 * s)          # LeakyReLU(0.2)
        s = s + neg_mask                          # additive -1e30 non-edge mask
        s = s - jnp.max(s, axis=1, keepdims=True)
        e = jnp.exp(s)                            # masked entries underflow to exactly 0
        # Self-loops guarantee >= 1 edge per row; approx reciprocal (EUP) is fine
        # for inference-level accuracy.
        inv = pl.reciprocal(jnp.sum(e, axis=1, keepdims=True), approx=True)
        attn = (e * inv).astype(jnp.bfloat16)     # softmax over neighbours j
        acc = acc + jnp.dot(attn, xw_bf[:, h * fdim:(h + 1) * fdim],
                            preferred_element_type=jnp.float32)
    out = acc * jnp.float32(1.0 / heads) + b_ref[...]   # concat=False: mean + bias
    if apply_elu:
        out = jnp.where(out > 0, out, jnp.exp(jnp.minimum(out, 0.0)) - 1.0)  # ELU(1)
    return out


def _fused_gnn_mlp_kernel(x_ref, adj_ref, w1_ref, att1_ref, b1_ref,
                          w2_ref, att2_ref, b2_ref,
                          fw1_ref, fb1_ref, fw2_ref, fb2_ref, o_ref,
                          *, heads, f1, f2):
    x = x_ref[...].astype(jnp.bfloat16)                     # [N, F_in]
    # int8 adjacency -> additive mask, computed once and reused 2*heads times.
    adj_f = adj_ref[...].astype(jnp.float32)                # [N, N]
    neg_mask = jnp.where(adj_f > 0.0, jnp.float32(0.0), jnp.float32(NEG_INF))
    eye_h = (lax.broadcasted_iota(jnp.int32, (heads, heads), 0) ==
             lax.broadcasted_iota(jnp.int32, (heads, heads), 1)).astype(jnp.float32)

    # Two fused GATConv layers; intermediates never leave VMEM / vregs.
    h1 = _gat_block(x, neg_mask, eye_h, w1_ref, att1_ref, b1_ref,
                    heads=heads, fdim=f1, apply_elu=True)
    h2 = _gat_block(h1.astype(jnp.bfloat16), neg_mask, eye_h,
                    w2_ref, att2_ref, b2_ref,
                    heads=heads, fdim=f2, apply_elu=False)

    # Collapsed per-slot MLP tail: two matmuls over ALL N rows (block-diagonal fc_w2,
    # lane-padded to 128 output columns).  Host picks each row's valid slot block.
    hid = jnp.dot(h2.astype(jnp.bfloat16), fw1_ref[...],
                  preferred_element_type=jnp.float32) + fb1_ref[...]     # [N, S*64]
    hid = jnp.maximum(hid, 0.0)                                          # ReLU
    y = jnp.dot(hid.astype(jnp.bfloat16), fw2_ref[...],
                preferred_element_type=jnp.float32) + fb2_ref[...]       # [N, 128]
    o_ref[...] = y.astype(o_ref.dtype)          # single lane-dense store


def fused_gnn_mlp(x, adj_i8, fp):
    n = x.shape[0]
    y_pad = fp["fw2"].shape[1]
    kernel = functools.partial(_fused_gnn_mlp_kernel, heads=HEADS,
                               f1=H_PAD, f2=OUT_FEATS)
    vmem = pl.BlockSpec(memory_space=pltpu.MemorySpace.VMEM)
    return pl.pallas_call(
        kernel,
        out_shape=jax.ShapeDtypeStruct((n, y_pad), jnp.float32),
        in_specs=[vmem] * 12,
        out_specs=vmem,
    )(x, adj_i8, fp["w1"], fp["att1"], fp["b1"],
      fp["w2"], fp["att2"], fp["b2"],
      fp["fw1"], fp["fb1"], fp["fw2"], fp["fb2"])


# --------------------------- parameters & preparation ---------------------------
def init_params(key, seq_len, input_size, output_size):
    ks = jax.random.split(key, 12)

    def nrm(k, shape, scale=0.1):
        return scale * jax.random.normal(k, shape, jnp.float32)

    return dict(
        # GATConv 1: seq_len -> 100, 4 heads, concat=False
        w1=nrm(ks[0], (seq_len, HEADS * H_FEATS)),
        att_src1=nrm(ks[1], (HEADS, H_FEATS)),
        att_dst1=nrm(ks[2], (HEADS, H_FEATS)),
        bias1=nrm(ks[3], (1, H_FEATS)),
        # GATConv 2: 100 -> 128, 4 heads, concat=False
        w2=nrm(ks[4], (H_FEATS, HEADS * OUT_FEATS)),
        att_src2=nrm(ks[5], (HEADS, OUT_FEATS)),
        att_dst2=nrm(ks[6], (HEADS, OUT_FEATS)),
        bias2=nrm(ks[7], (1, OUT_FEATS)),
        # self.fcs: one Linear(128,64)->ReLU->Linear(64,output_size) per input slot
        fc_w1=nrm(ks[8], (input_size, OUT_FEATS, HIDDEN)),
        fc_b1=nrm(ks[9], (input_size, 1, HIDDEN)),
        fc_w2=nrm(ks[10], (input_size, HIDDEN, output_size)),
        fc_b2=nrm(ks[11], (input_size, 1, output_size)),
    )
    # NOTE: self.fc in the PyTorch module is defined but never used in forward().


def prepare_fused_params(params):
    """Host-side one-time prep: lane-pad layer 1 to 128, fold attention vectors into
    the weights, concat / block-diagonalize the per-slot MLPs, and cast the MXU
    operands to bf16 (biases stay f32)."""
    bf16 = jnp.bfloat16
    heads = HEADS

    def pad_head_cols(w, f, f_pad):
        fi = w.shape[0]
        w = np.asarray(w).reshape(fi, heads, f)
        w = np.pad(w, ((0, 0), (0, 0), (0, f_pad - f)))
        return w.reshape(fi, heads * f_pad)

    def block_diag_att(att_src, att_dst, f_pad):
        h, f = att_src.shape
        att = np.zeros((h * f_pad, 2 * h), np.float32)
        for i in range(h):
            att[i * f_pad:i * f_pad + f, i] = att_src[i]
            att[i * f_pad:i * f_pad + f, h + i] = att_dst[i]
        return att

    # GATConv 1: pad the 100-wide heads to 128 lanes (zero cols / bias).
    w1 = pad_head_cols(params["w1"], H_FEATS, H_PAD)                      # [F_in, H*128]
    b1 = np.pad(np.asarray(params["bias1"]), ((0, 0), (0, H_PAD - H_FEATS)))
    att1 = w1 @ block_diag_att(np.asarray(params["att_src1"]),
                               np.asarray(params["att_dst1"]), H_PAD)     # [F_in, 2H]
    # GATConv 2 consumes the zero-padded h1, so zero-pad w2's input rows.
    w2 = np.pad(np.asarray(params["w2"]), ((0, H_PAD - H_FEATS), (0, 0)))  # [128, H*128]
    att2 = w2 @ block_diag_att(np.asarray(params["att_src2"]),
                               np.asarray(params["att_dst2"]), OUT_FEATS)  # [128, 2H]

    # Collapsed per-slot MLP tail.
    fc_w1 = np.asarray(params["fc_w1"])          # [S, 128, 64]
    fc_b1 = np.asarray(params["fc_b1"])          # [S, 1, 64]
    fc_w2 = np.asarray(params["fc_w2"])          # [S, 64, osz]
    fc_b2 = np.asarray(params["fc_b2"])          # [S, 1, osz]
    S, dfeat, hid = fc_w1.shape
    osz = fc_w2.shape[-1]
    y_pad = max(128, ((S * osz + 127) // 128) * 128)   # lane-dense output width
    fw1 = np.transpose(fc_w1, (1, 0, 2)).reshape(dfeat, S * hid)          # [128, S*64]
    fb1 = fc_b1.reshape(1, S * hid)
    fw2 = np.zeros((S * hid, y_pad), np.float32)                          # block-diag
    fb2 = np.zeros((1, y_pad), np.float32)
    for s in range(S):
        fw2[s * hid:(s + 1) * hid, s * osz:(s + 1) * osz] = fc_w2[s]
        fb2[0, s * osz:(s + 1) * osz] = fc_b2[s, 0]

    return dict(w1=jnp.asarray(w1, bf16), att1=jnp.asarray(att1, bf16),
                b1=jnp.asarray(b1, jnp.float32),
                w2=jnp.asarray(w2, bf16), att2=jnp.asarray(att2, bf16),
                b2=jnp.asarray(params["bias2"], jnp.float32),
                fw1=jnp.asarray(fw1, bf16), fb1=jnp.asarray(fb1, jnp.float32),
                fw2=jnp.asarray(fw2, bf16), fb2=jnp.asarray(fb2, jnp.float32))


# ----------------------------------- model glue -----------------------------------
def gnn_mlp_forward(fp, x, adj_i8, y, batch_size, input_size, output_size):
    out = fused_gnn_mlp(x, adj_i8, fp)                       # [N, y_pad]
    # Nodes are graph-major (node = g*input_size + s); pick each row's own slot block.
    ov = out[:, :input_size * output_size].reshape(
        batch_size, input_size, input_size, output_size)
    idx = jnp.arange(input_size)
    pred = jnp.transpose(ov[:, idx, idx, :], (1, 0, 2))      # [input_size, batch, osz]
    yg = y.reshape(batch_size, input_size, -1)
    return pred, yg


# --------------------------- pure-JAX f32 reference ---------------------------
def reference_forward(params, x, adj, batch_size, input_size, output_size):
    heads = HEADS
    mask = adj > 0

    def gat(xin, w, a_src, a_dst, bias, fdim, elu):
        xw = (xin @ w).reshape(-1, heads, fdim)
        out = 0.0
        for h in range(heads):
            xh = xw[:, h, :]
            es = xh @ a_src[h]
            ed = xh @ a_dst[h]
            s = ed[:, None] + es[None, :]
            s = jnp.where(s > 0, s, 0.2 * s)
            s = jnp.where(mask, s, -jnp.inf)
            attn = jax.nn.softmax(s, axis=1)
            out = out + attn @ xh
        out = out / heads + bias
        if elu:
            out = jnp.where(out > 0, out, jnp.exp(out) - 1.0)
        return out

    h1 = gat(x, params["w1"], params["att_src1"], params["att_dst1"],
             params["bias1"], H_FEATS, True)
    h2 = gat(h1, params["w2"], params["att_src2"], params["att_dst2"],
             params["bias2"], OUT_FEATS, False)
    h2g = h2.reshape(batch_size, input_size, -1)
    preds = []
    for s in range(input_size):
        hid = jnp.maximum(h2g[:, s, :] @ params["fc_w1"][s] + params["fc_b1"][s], 0.0)
        preds.append(hid @ params["fc_w2"][s] + params["fc_b2"][s])
    return jnp.stack(preds, axis=0)


if __name__ == "__main__":
    # args: seq_len=8, input_size=3, output_size=2; batch of 4 graphs,
    # each graph has input_size nodes (one per input series).
    seq_len, input_size, output_size = 8, 3, 2
    batch_size = 4
    N = batch_size * input_size

    key = jax.random.PRNGKey(0)
    kx, ky, kp = jax.random.split(key, 3)
    x = jax.random.normal(kx, (N, seq_len), jnp.float32)            # data.x
    y_data = jax.random.normal(ky, (N, output_size), jnp.float32)   # data.y

    # Dense adjacency: fully connected within each graph + self loops
    # (GATConv add_self_loops=True).  Stored as int8 (review item: compressed adj).
    batch_vec = np.repeat(np.arange(batch_size), input_size)
    adj_np = (batch_vec[:, None] == batch_vec[None, :]).astype(np.int8)
    np.fill_diagonal(adj_np, 1)
    adj_i8 = jnp.asarray(adj_np)

    params = init_params(kp, seq_len, input_size, output_size)
    fp = prepare_fused_params(params)

    pred, y = gnn_mlp_forward(fp, x, adj_i8, y_data,
                              batch_size, input_size, output_size)
    jax.block_until_ready((pred, y))

    assert pred.shape == (input_size, batch_size, output_size)
    assert y.shape == (batch_size, input_size, output_size)
    assert bool(jnp.all(jnp.isfinite(pred)))

    # bf16 MXU operands + approx reciprocal => loose (but meaningful) tolerance.
    ref = reference_forward(params, x, jnp.asarray(adj_np, jnp.float32),
                            batch_size, input_size, output_size)
    assert bool(jnp.allclose(pred, ref, atol=5e-2, rtol=1e-1))
    print("KERNEL_OK")
</pallas_src>

<mosaic_0001>
module attributes {stable_mosaic.version = 11 : i64} {
  func.func @_fused_gnn_mlp_kernel(%arg0: memref<12x8xf32, #tpu.memory_space<vmem>>, %arg1: memref<12x12xi8, #tpu.memory_space<vmem>>, %arg2: memref<8x512xbf16, #tpu.memory_space<vmem>>, %arg3: memref<8x8xbf16, #tpu.memory_space<vmem>>, %arg4: memref<1x128xf32, #tpu.memory_space<vmem>>, %arg5: memref<128x512xbf16, #tpu.memory_space<vmem>>, %arg6: memref<128x8xbf16, #tpu.memory_space<vmem>>, %arg7: memref<1x128xf32, #tpu.memory_space<vmem>>, %arg8: memref<128x192xbf16, #tpu.memory_space<vmem>>, %arg9: memref<1x192xf32, #tpu.memory_space<vmem>>, %arg10: memref<192x128xbf16, #tpu.memory_space<vmem>>, %arg11: memref<1x128xf32, #tpu.memory_space<vmem>>, %arg12: memref<12x128xf32, #tpu.memory_space<vmem>>) attributes {dimension_semantics = [], scalar_prefetch = 0 : i64, scratch_operands = 0 : i64, tpu.core_type = #tpu.core_type<tc>} {
    %c0 = arith.constant 0 : index
    %c0_0 = arith.constant 0 : index
    %0 = vector.load %arg0[%c0, %c0_0] : memref<12x8xf32, #tpu.memory_space<vmem>>, vector<12x8xf32>
    %1 = arith.truncf %0 : vector<12x8xf32> to vector<12x8xbf16>
    %c0_1 = arith.constant 0 : index
    %c0_2 = arith.constant 0 : index
    %2 = vector.load %arg1[%c0_1, %c0_2] : memref<12x12xi8, #tpu.memory_space<vmem>>, vector<12x12xi8>
    %3 = arith.sitofp %2 : vector<12x12xi8> to vector<12x12xf32>
    %cst = arith.constant 0.000000e+00 : f32
    %4 = vector.broadcast %cst : f32 to vector<12x12xf32>
    %5 = arith.cmpf ogt, %3, %4 : vector<12x12xf32>
    %cst_3 = arith.constant 0.000000e+00 : f32
    %cst_4 = arith.constant -1.000000e+30 : f32
    %6 = vector.broadcast %cst_3 : f32 to vector<12x12xf32>
    %7 = vector.broadcast %cst_4 : f32 to vector<12x12xf32>
    %8 = arith.select %5, %6, %7 : vector<12x12xi1>, vector<12x12xf32>
    %9 = tpu.iota {dimensions = array<i32: 0>} : vector<4x4xi32>
    %10 = tpu.iota {dimensions = array<i32: 1>} : vector<4x4xi32>
    %11 = arith.cmpi eq, %9, %10 : vector<4x4xi32>
    %12 = arith.extui %11 : vector<4x4xi1> to vector<4x4xi32>
    %13 = arith.sitofp %12 : vector<4x4xi32> to vector<4x4xf32>
    %c0_5 = arith.constant 0 : index
    %c0_6 = arith.constant 0 : index
    %14 = vector.load %arg2[%c0_5, %c0_6] : memref<8x512xbf16, #tpu.memory_space<vmem>>, vector<8x512xbf16>
    %cst_7 = arith.constant dense<0.000000e+00> : vector<12x512xf32>
    %15 = tpu.matmul %1, %14, %cst_7 {dimension_numbers = #tpu.dot_dimension_numbers<[1], [0], [0], [1], [0, 0, 1, 1], [], []>} : vector<12x8xbf16>, vector<8x512xbf16>, vector<12x512xf32> -> vector<12x512xf32>
    %16 = arith.truncf %15 : vector<12x512xf32> to vector<12x512xbf16>
    %c0_8 = arith.constant 0 : index
    %c0_9 = arith.constant 0 : index
    %17 = vector.load %arg3[%c0_8, %c0_9] : memref<8x8xbf16, #tpu.memory_space<vmem>>, vector<8x8xbf16>
    %cst_10 = arith.constant dense<0.000000e+00> : vector<12x8xf32>
    %18 = tpu.matmul %1, %17, %cst_10 {dimension_numbers = #tpu.dot_dimension_numbers<[1], [0], [0], [1], [0, 0, 1, 1], [], []>} : vector<12x8xbf16>, vector<8x8xbf16>, vector<12x8xf32> -> vector<12x8xf32>
    %19 = vector.extract_strided_slice %18 {offsets = [0, 0], sizes = [12, 4], strides = [1, 1]} : vector<12x8xf32> to vector<12x4xf32>
    %cst_11 = arith.constant dense<0.000000e+00> : vector<4x12xf32>
    %20 = tpu.matmul %13, %19, %cst_11 {dimension_numbers = #tpu.dot_dimension_numbers<[1], [1], [0], [0], [0, 0, 1, 0], [], []>} : vector<4x4xf32>, vector<12x4xf32>, vector<4x12xf32> -> vector<4x12xf32>
    %cst_12 = arith.constant 0.000000e+00 : f32
    %21 = vector.broadcast %cst_12 : f32 to vector<12x128xf32>
    %22 = vector.extract_strided_slice %18 {offsets = [0, 4], sizes = [12, 1], strides = [1, 1]} : vector<12x8xf32> to vector<12x1xf32>
    %23 = vector.extract_strided_slice %20 {offsets = [0, 0], sizes = [1, 12], strides = [1, 1]} : vector<4x12xf32> to vector<1x12xf32>
    %24 = vector.broadcast %22 : vector<12x1xf32> to vector<12x12xf32>
    %25 = vector.broadcast %23 : vector<1x12xf32> to vector<12x12xf32>
    %26 = arith.addf %24, %25 : vector<12x12xf32>
    %cst_13 = arith.constant 0.000000e+00 : f32
    %27 = vector.broadcast %cst_13 : f32 to vector<12x12xf32>
    %28 = arith.cmpf ogt, %26, %27 : vector<12x12xf32>
    %cst_14 = arith.constant 2.000000e-01 : f32
    %29 = vector.broadcast %cst_14 : f32 to vector<12x12xf32>
    %30 = arith.mulf %29, %26 : vector<12x12xf32>
    %31 = arith.select %28, %26, %30 : vector<12x12xi1>, vector<12x12xf32>
    %32 = arith.addf %31, %8 : vector<12x12xf32>
    %cst_15 = arith.constant dense<0xFF800000> : vector<12xf32>
    %33 = vector.multi_reduction <maximumf>, %32, %cst_15 [1] : vector<12x12xf32> to vector<12xf32>
    %34 = vector.shape_cast %33 : vector<12xf32> to vector<12x1xf32>
    %35 = vector.broadcast %34 : vector<12x1xf32> to vector<12x12xf32>
    %36 = arith.subf %32, %35 : vector<12x12xf32>
    %37 = math.exp %36 : vector<12x12xf32>
    %cst_16 = arith.constant dense<0.000000e+00> : vector<12xf32>
    %38 = vector.multi_reduction <add>, %37, %cst_16 [1] : vector<12x12xf32> to vector<12xf32>
    %39 = vector.shape_cast %38 : vector<12xf32> to vector<12x1xf32>
    %40 = tpu.reciprocal %39 {approx = true} : vector<12x1xf32> -> vector<12x1xf32>
    %41 = vector.broadcast %40 : vector<12x1xf32> to vector<12x12xf32>
    %42 = arith.mulf %37, %41 : vector<12x12xf32>
    %43 = arith.truncf %42 : vector<12x12xf32> to vector<12x12xbf16>
    %44 = vector.extract_strided_slice %16 {offsets = [0, 0], sizes = [12, 128], strides = [1, 1]} : vector<12x512xbf16> to vector<12x128xbf16>
    %cst_17 = arith.constant dense<0.000000e+00> : vector<12x128xf32>
    %45 = tpu.matmul %43, %44, %cst_17 {dimension_numbers = #tpu.dot_dimension_numbers<[1], [0], [0], [1], [0, 0, 1, 1], [], []>} : vector<12x12xbf16>, vector<12x128xbf16>, vector<12x128xf32> -> vector<12x128xf32>
    %46 = arith.addf %21, %45 : vector<12x128xf32>
    %47 = vector.extract_strided_slice %18 {offsets = [0, 5], sizes = [12, 1], strides = [1, 1]} : vector<12x8xf32> to vector<12x1xf32>
    %48 = vector.extract_strided_slice %20 {offsets = [1, 0], sizes = [1, 12], strides = [1, 1]} : vector<4x12xf32> to vector<1x12xf32>
    %49 = vector.broadcast %47 : vector<12x1xf32> to vector<12x12xf32>
    %50 = vector.broadcast %48 : vector<1x12xf32> to vector<12x12xf32>
    %51 = arith.addf %49, %50 : vector<12x12xf32>
    %cst_18 = arith.constant 0.000000e+00 : f32
    %52 = vector.broadcast %cst_18 : f32 to vector<12x12xf32>
    %53 = arith.cmpf ogt, %51, %52 : vector<12x12xf32>
    %cst_19 = arith.constant 2.000000e-01 : f32
    %54 = vector.broadcast %cst_19 : f32 to vector<12x12xf32>
    %55 = arith.mulf %54, %51 : vector<12x12xf32>
    %56 = arith.select %53, %51, %55 : vector<12x12xi1>, vector<12x12xf32>
    %57 = arith.addf %56, %8 : vector<12x12xf32>
    %cst_20 = arith.constant dense<0xFF800000> : vector<12xf32>
    %58 = vector.multi_reduction <maximumf>, %57, %cst_20 [1] : vector<12x12xf32> to vector<12xf32>
    %59 = vector.shape_cast %58 : vector<12xf32> to vector<12x1xf32>
    %60 = vector.broadcast %59 : vector<12x1xf32> to vector<12x12xf32>
    %61 = arith.subf %57, %60 : vector<12x12xf32>
    %62 = math.exp %61 : vector<12x12xf32>
    %cst_21 = arith.constant dense<0.000000e+00> : vector<12xf32>
    %63 = vector.multi_reduction <add>, %62, %cst_21 [1] : vector<12x12xf32> to vector<12xf32>
    %64 = vector.shape_cast %63 : vector<12xf32> to vector<12x1xf32>
    %65 = tpu.reciprocal %64 {approx = true} : vector<12x1xf32> -> vector<12x1xf32>
    %66 = vector.broadcast %65 : vector<12x1xf32> to vector<12x12xf32>
    %67 = arith.mulf %62, %66 : vector<12x12xf32>
    %68 = arith.truncf %67 : vector<12x12xf32> to vector<12x12xbf16>
    %69 = vector.extract_strided_slice %16 {offsets = [0, 128], sizes = [12, 128], strides = [1, 1]} : vector<12x512xbf16> to vector<12x128xbf16>
    %cst_22 = arith.constant dense<0.000000e+00> : vector<12x128xf32>
    %70 = tpu.matmul %68, %69, %cst_22 {dimension_numbers = #tpu.dot_dimension_numbers<[1], [0], [0], [1], [0, 0, 1, 1], [], []>} : vector<12x12xbf16>, vector<12x128xbf16>, vector<12x128xf32> -> vector<12x128xf32>
    %71 = arith.addf %46, %70 : vector<12x128xf32>
    %72 = vector.extract_strided_slice %18 {offsets = [0, 6], sizes = [12, 1], strides = [1, 1]} : vector<12x8xf32> to vector<12x1xf32>
    %73 = vector.extract_strided_slice %20 {offsets = [2, 0], sizes = [1, 12], strides = [1, 1]} : vector<4x12xf32> to vector<1x12xf32>
    %74 = vector.broadcast %72 : vector<12x1xf32> to vector<12x12xf32>
    %75 = vector.broadcast %73 : vector<1x12xf32> to vector<12x12xf32>
    %76 = arith.addf %74, %75 : vector<12x12xf32>
    %cst_23 = arith.constant 0.000000e+00 : f32
    %77 = vector.broadcast %cst_23 : f32 to vector<12x12xf32>
    %78 = arith.cmpf ogt, %76, %77 : vector<12x12xf32>
    %cst_24 = arith.constant 2.000000e-01 : f32
    %79 = vector.broadcast %cst_24 : f32 to vector<12x12xf32>
    %80 = arith.mulf %79, %76 : vector<12x12xf32>
    %81 = arith.select %78, %76, %80 : vector<12x12xi1>, vector<12x12xf32>
    %82 = arith.addf %81, %8 : vector<12x12xf32>
    %cst_25 = arith.constant dense<0xFF800000> : vector<12xf32>
    %83 = vector.multi_reduction <maximumf>, %82, %cst_25 [1] : vector<12x12xf32> to vector<12xf32>
    %84 = vector.shape_cast %83 : vector<12xf32> to vector<12x1xf32>
    %85 = vector.broadcast %84 : vector<12x1xf32> to vector<12x12xf32>
    %86 = arith.subf %82, %85 : vector<12x12xf32>
    %87 = math.exp %86 : vector<12x12xf32>
    %cst_26 = arith.constant dense<0.000000e+00> : vector<12xf32>
    %88 = vector.multi_reduction <add>, %87, %cst_26 [1] : vector<12x12xf32> to vector<12xf32>
    %89 = vector.shape_cast %88 : vector<12xf32> to vector<12x1xf32>
    %90 = tpu.reciprocal %89 {approx = true} : vector<12x1xf32> -> vector<12x1xf32>
    %91 = vector.broadcast %90 : vector<12x1xf32> to vector<12x12xf32>
    %92 = arith.mulf %87, %91 : vector<12x12xf32>
    %93 = arith.truncf %92 : vector<12x12xf32> to vector<12x12xbf16>
    %94 = vector.extract_strided_slice %16 {offsets = [0, 256], sizes = [12, 128], strides = [1, 1]} : vector<12x512xbf16> to vector<12x128xbf16>
    %cst_27 = arith.constant dense<0.000000e+00> : vector<12x128xf32>
    %95 = tpu.matmul %93, %94, %cst_27 {dimension_numbers = #tpu.dot_dimension_numbers<[1], [0], [0], [1], [0, 0, 1, 1], [], []>} : vector<12x12xbf16>, vector<12x128xbf16>, vector<12x128xf32> -> vector<12x128xf32>
    %96 = arith.addf %71, %95 : vector<12x128xf32>
    %97 = vector.extract_strided_slice %18 {offsets = [0, 7], sizes = [12, 1], strides = [1, 1]} : vector<12x8xf32> to vector<12x1xf32>
    %98 = vector.extract_strided_slice %20 {offsets = [3, 0], sizes = [1, 12], strides = [1, 1]} : vector<4x12xf32> to vector<1x12xf32>
    %99 = vector.broadcast %97 : vector<12x1xf32> to vector<12x12xf32>
    %100 = vector.broadcast %98 : vector<1x12xf32> to vector<12x12xf32>
    %101 = arith.addf %99, %100 : vector<12x12xf32>
    %cst_28 = arith.constant 0.000000e+00 : f32
    %102 = vector.broadcast %cst_28 : f32 to vector<12x12xf32>
    %103 = arith.cmpf ogt, %101, %102 : vector<12x12xf32>
    %cst_29 = arith.constant 2.000000e-01 : f32
    %104 = vector.broadcast %cst_29 : f32 to vector<12x12xf32>
    %105 = arith.mulf %104, %101 : vector<12x12xf32>
    %106 = arith.select %103, %101, %105 : vector<12x12xi1>, vector<12x12xf32>
    %107 = arith.addf %106, %8 : vector<12x12xf32>
    %cst_30 = arith.constant dense<0xFF800000> : vector<12xf32>
    %108 = vector.multi_reduction <maximumf>, %107, %cst_30 [1] : vector<12x12xf32> to vector<12xf32>
    %109 = vector.shape_cast %108 : vector<12xf32> to vector<12x1xf32>
    %110 = vector.broadcast %109 : vector<12x1xf32> to vector<12x12xf32>
    %111 = arith.subf %107, %110 : vector<12x12xf32>
    %112 = math.exp %111 : vector<12x12xf32>
    %cst_31 = arith.constant dense<0.000000e+00> : vector<12xf32>
    %113 = vector.multi_reduction <add>, %112, %cst_31 [1] : vector<12x12xf32> to vector<12xf32>
    %114 = vector.shape_cast %113 : vector<12xf32> to vector<12x1xf32>
    %115 = tpu.reciprocal %114 {approx = true} : vector<12x1xf32> -> vector<12x1xf32>
    %116 = vector.broadcast %115 : vector<12x1xf32> to vector<12x12xf32>
    %117 = arith.mulf %112, %116 : vector<12x12xf32>
    %118 = arith.truncf %117 : vector<12x12xf32> to vector<12x12xbf16>
    %119 = vector.extract_strided_slice %16 {offsets = [0, 384], sizes = [12, 128], strides = [1, 1]} : vector<12x512xbf16> to vector<12x128xbf16>
    %cst_32 = arith.constant dense<0.000000e+00> : vector<12x128xf32>
    %120 = tpu.matmul %118, %119, %cst_32 {dimension_numbers = #tpu.dot_dimension_numbers<[1], [0], [0], [1], [0, 0, 1, 1], [], []>} : vector<12x12xbf16>, vector<12x128xbf16>, vector<12x128xf32> -> vector<12x128xf32>
    %121 = arith.addf %96, %120 : vector<12x128xf32>
    %cst_33 = arith.constant 2.500000e-01 : f32
    %122 = vector.broadcast %cst_33 : f32 to vector<12x128xf32>
    %123 = arith.mulf %121, %122 : vector<12x128xf32>
    %c0_34 = arith.constant 0 : index
    %c0_35 = arith.constant 0 : index
    %124 = vector.load %arg4[%c0_34, %c0_35] : memref<1x128xf32, #tpu.memory_space<vmem>>, vector<1x128xf32>
    %125 = vector.broadcast %124 : vector<1x128xf32> to vector<12x128xf32>
    %126 = arith.addf %123, %125 : vector<12x128xf32>
    %cst_36 = arith.constant 0.000000e+00 : f32
    %127 = vector.broadcast %cst_36 : f32 to vector<12x128xf32>
    %128 = arith.cmpf ogt, %126, %127 : vector<12x128xf32>
    %cst_37 = arith.constant 0.000000e+00 : f32
    %129 = vector.broadcast %cst_37 : f32 to vector<12x128xf32>
    %130 = arith.minimumf %126, %129 : vector<12x128xf32>
    %131 = math.exp %130 : vector<12x128xf32>
    %cst_38 = arith.constant 1.000000e+00 : f32
    %132 = vector.broadcast %cst_38 : f32 to vector<12x128xf32>
    %133 = arith.subf %131, %132 : vector<12x128xf32>
    %134 = arith.select %128, %126, %133 : vector<12x128xi1>, vector<12x128xf32>
    %135 = arith.truncf %134 : vector<12x128xf32> to vector<12x128xbf16>
    %c0_39 = arith.constant 0 : index
    %c0_40 = arith.constant 0 : index
    %136 = vector.load %arg5[%c0_39, %c0_40] : memref<128x512xbf16, #tpu.memory_space<vmem>>, vector<128x512xbf16>
    %cst_41 = arith.constant dense<0.000000e+00> : vector<12x512xf32>
    %137 = tpu.matmul %135, %136, %cst_41 {dimension_numbers = #tpu.dot_dimension_numbers<[1], [0], [0], [1], [0, 0, 1, 1], [], []>} : vector<12x128xbf16>, vector<128x512xbf16>, vector<12x512xf32> -> vector<12x512xf32>
    %138 = arith.truncf %137 : vector<12x512xf32> to vector<12x512xbf16>
    %c0_42 = arith.constant 0 : index
    %c0_43 = arith.constant 0 : index
    %139 = vector.load %arg6[%c0_42, %c0_43] : memref<128x8xbf16, #tpu.memory_space<vmem>>, vector<128x8xbf16>
    %cst_44 = arith.constant dense<0.000000e+00> : vector<12x8xf32>
    %140 = tpu.matmul %135, %139, %cst_44 {dimension_numbers = #tpu.dot_dimension_numbers<[1], [0], [0], [1], [0, 0, 1, 1], [], []>} : vector<12x128xbf16>, vector<128x8xbf16>, vector<12x8xf32> -> vector<12x8xf32>
    %141 = vector.extract_strided_slice %140 {offsets = [0, 0], sizes = [12, 4], strides = [1, 1]} : vector<12x8xf32> to vector<12x4xf32>
    %cst_45 = arith.constant dense<0.000000e+00> : vector<4x12xf32>
    %142 = tpu.matmul %13, %141, %cst_45 {dimension_numbers = #tpu.dot_dimension_numbers<[1], [1], [0], [0], [0, 0, 1, 0], [], []>} : vector<4x4xf32>, vector<12x4xf32>, vector<4x12xf32> -> vector<4x12xf32>
    %cst_46 = arith.constant 0.000000e+00 : f32
    %143 = vector.broadcast %cst_46 : f32 to vector<12x128xf32>
    %144 = vector.extract_strided_slice %140 {offsets = [0, 4], sizes = [12, 1], strides = [1, 1]} : vector<12x8xf32> to vector<12x1xf32>
    %145 = vector.extract_strided_slice %142 {offsets = [0, 0], sizes = [1, 12], strides = [1, 1]} : vector<4x12xf32> to vector<1x12xf32>
    %146 = vector.broadcast %144 : vector<12x1xf32> to vector<12x12xf32>
    %147 = vector.broadcast %145 : vector<1x12xf32> to vector<12x12xf32>
    %148 = arith.addf %146, %147 : vector<12x12xf32>
    %cst_47 = arith.constant 0.000000e+00 : f32
    %149 = vector.broadcast %cst_47 : f32 to vector<12x12xf32>
    %150 = arith.cmpf ogt, %148, %149 : vector<12x12xf32>
    %cst_48 = arith.constant 2.000000e-01 : f32
    %151 = vector.broadcast %cst_48 : f32 to vector<12x12xf32>
    %152 = arith.mulf %151, %148 : vector<12x12xf32>
    %153 = arith.select %150, %148, %152 : vector<12x12xi1>, vector<12x12xf32>
    %154 = arith.addf %153, %8 : vector<12x12xf32>
    %cst_49 = arith.constant dense<0xFF800000> : vector<12xf32>
    %155 = vector.multi_reduction <maximumf>, %154, %cst_49 [1] : vector<12x12xf32> to vector<12xf32>
    %156 = vector.shape_cast %155 : vector<12xf32> to vector<12x1xf32>
    %157 = vector.broadcast %156 : vector<12x1xf32> to vector<12x12xf32>
    %158 = arith.subf %154, %157 : vector<12x12xf32>
    %159 = math.exp %158 : vector<12x12xf32>
    %cst_50 = arith.constant dense<0.000000e+00> : vector<12xf32>
    %160 = vector.multi_reduction <add>, %159, %cst_50 [1] : vector<12x12xf32> to vector<12xf32>
    %161 = vector.shape_cast %160 : vector<12xf32> to vector<12x1xf32>
    %162 = tpu.reciprocal %161 {approx = true} : vector<12x1xf32> -> vector<12x1xf32>
    %163 = vector.broadcast %162 : vector<12x1xf32> to vector<12x12xf32>
    %164 = arith.mulf %159, %163 : vector<12x12xf32>
    %165 = arith.truncf %164 : vector<12x12xf32> to vector<12x12xbf16>
    %166 = vector.extract_strided_slice %138 {offsets = [0, 0], sizes = [12, 128], strides = [1, 1]} : vector<12x512xbf16> to vector<12x128xbf16>
    %cst_51 = arith.constant dense<0.000000e+00> : vector<12x128xf32>
    %167 = tpu.matmul %165, %166, %cst_51 {dimension_numbers = #tpu.dot_dimension_numbers<[1], [0], [0], [1], [0, 0, 1, 1], [], []>} : vector<12x12xbf16>, vector<12x128xbf16>, vector<12x128xf32> -> vector<12x128xf32>
    %168 = arith.addf %143, %167 : vector<12x128xf32>
    %169 = vector.extract_strided_slice %140 {offsets = [0, 5], sizes = [12, 1], strides = [1, 1]} : vector<12x8xf32> to vector<12x1xf32>
    %170 = vector.extract_strided_slice %142 {offsets = [1, 0], sizes = [1, 12], strides = [1, 1]} : vector<4x12xf32> to vector<1x12xf32>
    %171 = vector.broadcast %169 : vector<12x1xf32> to vector<12x12xf32>
    %172 = vector.broadcast %170 : vector<1x12xf32> to vector<12x12xf32>
    %173 = arith.addf %171, %172 : vector<12x12xf32>
    %cst_52 = arith.constant 0.000000e+00 : f32
    %174 = vector.broadcast %cst_52 : f32 to vector<12x12xf32>
    %175 = arith.cmpf ogt, %173, %174 : vector<12x12xf32>
    %cst_53 = arith.constant 2.000000e-01 : f32
    %176 = vector.broadcast %cst_53 : f32 to vector<12x12xf32>
    %177 = arith.mulf %176, %173 : vector<12x12xf32>
    %178 = arith.select %175, %173, %177 : vector<12x12xi1>, vector<12x12xf32>
    %179 = arith.addf %178, %8 : vector<12x12xf32>
    %cst_54 = arith.constant dense<0xFF800000> : vector<12xf32>
    %180 = vector.multi_reduction <maximumf>, %179, %cst_54 [1] : vector<12x12xf32> to vector<12xf32>
    %181 = vector.shape_cast %180 : vector<12xf32> to vector<12x1xf32>
    %182 = vector.broadcast %181 : vector<12x1xf32> to vector<12x12xf32>
    %183 = arith.subf %179, %182 : vector<12x12xf32>
    %184 = math.exp %183 : vector<12x12xf32>
    %cst_55 = arith.constant dense<0.000000e+00> : vector<12xf32>
    %185 = vector.multi_reduction <add>, %184, %cst_55 [1] : vector<12x12xf32> to vector<12xf32>
    %186 = vector.shape_cast %185 : vector<12xf32> to vector<12x1xf32>
    %187 = tpu.reciprocal %186 {approx = true} : vector<12x1xf32> -> vector<12x1xf32>
    %188 = vector.broadcast %187 : vector<12x1xf32> to vector<12x12xf32>
    %189 = arith.mulf %184, %188 : vector<12x12xf32>
    %190 = arith.truncf %189 : vector<12x12xf32> to vector<12x12xbf16>
    %191 = vector.extract_strided_slice %138 {offsets = [0, 128], sizes = [12, 128], strides = [1, 1]} : vector<12x512xbf16> to vector<12x128xbf16>
    %cst_56 = arith.constant dense<0.000000e+00> : vector<12x128xf32>
    %192 = tpu.matmul %190, %191, %cst_56 {dimension_numbers = #tpu.dot_dimension_numbers<[1], [0], [0], [1], [0, 0, 1, 1], [], []>} : vector<12x12xbf16>, vector<12x128xbf16>, vector<12x128xf32> -> vector<12x128xf32>
    %193 = arith.addf %168, %192 : vector<12x128xf32>
    %194 = vector.extract_strided_slice %140 {offsets = [0, 6], sizes = [12, 1], strides = [1, 1]} : vector<12x8xf32> to vector<12x1xf32>
    %195 = vector.extract_strided_slice %142 {offsets = [2, 0], sizes = [1, 12], strides = [1, 1]} : vector<4x12xf32> to vector<1x12xf32>
    %196 = vector.broadcast %194 : vector<12x1xf32> to vector<12x12xf32>
    %197 = vector.broadcast %195 : vector<1x12xf32> to vector<12x12xf32>
    %198 = arith.addf %196, %197 : vector<12x12xf32>
    %cst_57 = arith.constant 0.000000e+00 : f32
    %199 = vector.broadcast %cst_57 : f32 to vector<12x12xf32>
    %200 = arith.cmpf ogt, %198, %199 : vector<12x12xf32>
    %cst_58 = arith.constant 2.000000e-01 : f32
    %201 = vector.broadcast %cst_58 : f32 to vector<12x12xf32>
    %202 = arith.mulf %201, %198 : vector<12x12xf32>
    %203 = arith.select %200, %198, %202 : vector<12x12xi1>, vector<12x12xf32>
    %204 = arith.addf %203, %8 : vector<12x12xf32>
    %cst_59 = arith.constant dense<0xFF800000> : vector<12xf32>
    %205 = vector.multi_reduction <maximumf>, %204, %cst_59 [1] : vector<12x12xf32> to vector<12xf32>
    %206 = vector.shape_cast %205 : vector<12xf32> to vector<12x1xf32>
    %207 = vector.broadcast %206 : vector<12x1xf32> to vector<12x12xf32>
    %208 = arith.subf %204, %207 : vector<12x12xf32>
    %209 = math.exp %208 : vector<12x12xf32>
    %cst_60 = arith.constant dense<0.000000e+00> : vector<12xf32>
    %210 = vector.multi_reduction <add>, %209, %cst_60 [1] : vector<12x12xf32> to vector<12xf32>
    %211 = vector.shape_cast %210 : vector<12xf32> to vector<12x1xf32>
    %212 = tpu.reciprocal %211 {approx = true} : vector<12x1xf32> -> vector<12x1xf32>
    %213 = vector.broadcast %212 : vector<12x1xf32> to vector<12x12xf32>
    %214 = arith.mulf %209, %213 : vector<12x12xf32>
    %215 = arith.truncf %214 : vector<12x12xf32> to vector<12x12xbf16>
    %216 = vector.extract_strided_slice %138 {offsets = [0, 256], sizes = [12, 128], strides = [1, 1]} : vector<12x512xbf16> to vector<12x128xbf16>
    %cst_61 = arith.constant dense<0.000000e+00> : vector<12x128xf32>
    %217 = tpu.matmul %215, %216, %cst_61 {dimension_numbers = #tpu.dot_dimension_numbers<[1], [0], [0], [1], [0, 0, 1, 1], [], []>} : vector<12x12xbf16>, vector<12x128xbf16>, vector<12x128xf32> -> vector<12x128xf32>
    %218 = arith.addf %193, %217 : vector<12x128xf32>
    %219 = vector.extract_strided_slice %140 {offsets = [0, 7], sizes = [12, 1], strides = [1, 1]} : vector<12x8xf32> to vector<12x1xf32>
    %220 = vector.extract_strided_slice %142 {offsets = [3, 0], sizes = [1, 12], strides = [1, 1]} : vector<4x12xf32> to vector<1x12xf32>
    %221 = vector.broadcast %219 : vector<12x1xf32> to vector<12x12xf32>
    %222 = vector.broadcast %220 : vector<1x12xf32> to vector<12x12xf32>
    %223 = arith.addf %221, %222 : vector<12x12xf32>
    %cst_62 = arith.constant 0.000000e+00 : f32
    %224 = vector.broadcast %cst_62 : f32 to vector<12x12xf32>
    %225 = arith.cmpf ogt, %223, %224 : vector<12x12xf32>
    %cst_63 = arith.constant 2.000000e-01 : f32
    %226 = vector.broadcast %cst_63 : f32 to vector<12x12xf32>
    %227 = arith.mulf %226, %223 : vector<12x12xf32>
    %228 = arith.select %225, %223, %227 : vector<12x12xi1>, vector<12x12xf32>
    %229 = arith.addf %228, %8 : vector<12x12xf32>
    %cst_64 = arith.constant dense<0xFF800000> : vector<12xf32>
    %230 = vector.multi_reduction <maximumf>, %229, %cst_64 [1] : vector<12x12xf32> to vector<12xf32>
    %231 = vector.shape_cast %230 : vector<12xf32> to vector<12x1xf32>
    %232 = vector.broadcast %231 : vector<12x1xf32> to vector<12x12xf32>
    %233 = arith.subf %229, %232 : vector<12x12xf32>
    %234 = math.exp %233 : vector<12x12xf32>
    %cst_65 = arith.constant dense<0.000000e+00> : vector<12xf32>
    %235 = vector.multi_reduction <add>, %234, %cst_65 [1] : vector<12x12xf32> to vector<12xf32>
    %236 = vector.shape_cast %235 : vector<12xf32> to vector<12x1xf32>
    %237 = tpu.reciprocal %236 {approx = true} : vector<12x1xf32> -> vector<12x1xf32>
    %238 = vector.broadcast %237 : vector<12x1xf32> to vector<12x12xf32>
    %239 = arith.mulf %234, %238 : vector<12x12xf32>
    %240 = arith.truncf %239 : vector<12x12xf32> to vector<12x12xbf16>
    %241 = vector.extract_strided_slice %138 {offsets = [0, 384], sizes = [12, 128], strides = [1, 1]} : vector<12x512xbf16> to vector<12x128xbf16>
    %cst_66 = arith.constant dense<0.000000e+00> : vector<12x128xf32>
    %242 = tpu.matmul %240, %241, %cst_66 {dimension_numbers = #tpu.dot_dimension_numbers<[1], [0], [0], [1], [0, 0, 1, 1], [], []>} : vector<12x12xbf16>, vector<12x128xbf16>, vector<12x128xf32> -> vector<12x128xf32>
    %243 = arith.addf %218, %242 : vector<12x128xf32>
    %cst_67 = arith.constant 2.500000e-01 : f32
    %244 = vector.broadcast %cst_67 : f32 to vector<12x128xf32>
    %245 = arith.mulf %243, %244 : vector<12x128xf32>
    %c0_68 = arith.constant 0 : index
    %c0_69 = arith.constant 0 : index
    %246 = vector.load %arg7[%c0_68, %c0_69] : memref<1x128xf32, #tpu.memory_space<vmem>>, vector<1x128xf32>
    %247 = vector.broadcast %246 : vector<1x128xf32> to vector<12x128xf32>
    %248 = arith.addf %245, %247 : vector<12x128xf32>
    %249 = arith.truncf %248 : vector<12x128xf32> to vector<12x128xbf16>
    %c0_70 = arith.constant 0 : index
    %c0_71 = arith.constant 0 : index
    %250 = vector.load %arg8[%c0_70, %c0_71] : memref<128x192xbf16, #tpu.memory_space<vmem>>, vector<128x192xbf16>
    %cst_72 = arith.constant dense<0.000000e+00> : vector<12x192xf32>
    %251 = tpu.matmul %249, %250, %cst_72 {dimension_numbers = #tpu.dot_dimension_numbers<[1], [0], [0], [1], [0, 0, 1, 1], [], []>} : vector<12x128xbf16>, vector<128x192xbf16>, vector<12x192xf32> -> vector<12x192xf32>
    %c0_73 = arith.constant 0 : index
    %c0_74 = arith.constant 0 : index
    %252 = vector.load %arg9[%c0_73, %c0_74] : memref<1x192xf32, #tpu.memory_space<vmem>>, vector<1x192xf32>
    %253 = vector.broadcast %252 : vector<1x192xf32> to vector<12x192xf32>
    %254 = arith.addf %251, %253 : vector<12x192xf32>
    %cst_75 = arith.constant 0.000000e+00 : f32
    %255 = vector.broadcast %cst_75 : f32 to vector<12x192xf32>
    %256 = arith.maximumf %254, %255 : vector<12x192xf32>
    %257 = arith.truncf %256 : vector<12x192xf32> to vector<12x192xbf16>
    %c0_76 = arith.constant 0 : index
    %c0_77 = arith.constant 0 : index
    %258 = vector.load %arg10[%c0_76, %c0_77] : memref<192x128xbf16, #tpu.memory_space<vmem>>, vector<192x128xbf16>
    %cst_78 = arith.constant dense<0.000000e+00> : vector<12x128xf32>
    %259 = tpu.matmul %257, %258, %cst_78 {dimension_numbers = #tpu.dot_dimension_numbers<[1], [0], [0], [1], [0, 0, 1, 1], [], []>} : vector<12x192xbf16>, vector<192x128xbf16>, vector<12x128xf32> -> vector<12x128xf32>
    %c0_79 = arith.constant 0 : index
    %c0_80 = arith.constant 0 : index
    %260 = vector.load %arg11[%c0_79, %c0_80] : memref<1x128xf32, #tpu.memory_space<vmem>>, vector<1x128xf32>
    %261 = vector.broadcast %260 : vector<1x128xf32> to vector<12x128xf32>
    %262 = arith.addf %259, %261 : vector<12x128xf32>
    %c0_81 = arith.constant 0 : index
    %c0_82 = arith.constant 0 : index
    %263 = vector.load %arg12[%c0_81, %c0_82] : memref<12x128xf32, #tpu.memory_space<vmem>>, vector<12x128xf32>
    tpu.vector_store %arg12[%c0_81, %c0_82], %262 {strides = array<i32>} : memref<12x128xf32, #tpu.memory_space<vmem>>, vector<12x128xf32>,
    return
  }
}

</mosaic_0001>

<llo_original>
// kernel: tpu_custom_call.1
$region0: #{tpu_custom_call.1}
  #allocation0 [shape = 'u32[]', space=smem, size = 0x4, offset = 0x4, fixed_abs, tag = 'smem constant byte address 0x4 - core index']
  #allocation1 [shape = 'u32[144,128]{1,0:T(1,128)}', space=vmem, size = 0x12000, scoped, tag = 'internal scratch']
  %s0 = inlined_call_operand.vmem [shape: f32[12,8], index: 0, kind: input, shape index: {}]
  %s1 = inlined_call_operand.vmem [shape: s8[12,12], index: 1, kind: input, shape index: {}]
  %s2 = inlined_call_operand.vmem [shape: bf16[8,512], index: 2, kind: input, shape index: {}]
  %s3 = inlined_call_operand.vmem [shape: bf16[8,8], index: 3, kind: input, shape index: {}]
  %s4 = inlined_call_operand.vmem [shape: f32[1,128], index: 4, kind: input, shape index: {}]
  %s5 = inlined_call_operand.vmem [shape: bf16[128,512], index: 5, kind: input, shape index: {}]
  %s6 = inlined_call_operand.vmem [shape: bf16[128,8], index: 6, kind: input, shape index: {}]
  %s7 = inlined_call_operand.vmem [shape: f32[1,128], index: 7, kind: input, shape index: {}]
  %s8 = inlined_call_operand.vmem [shape: bf16[128,192], index: 8, kind: input, shape index: {}]
  %s9 = inlined_call_operand.vmem [shape: f32[1,192], index: 9, kind: input, shape index: {}]
  %s10 = inlined_call_operand.hbm [shape: bf16[192,128], index: 10, kind: input, shape index: {}]
  %s11 = inlined_call_operand.vmem [shape: f32[1,128], index: 11, kind: input, shape index: {}]
  %s12 = inlined_call_operand.hbm [shape: f32[12,128], index: 12, kind: output, shape index: {}]
  %s13 = sld [smem:[#allocation0]]
  $region62: #{tpu_custom_call.1} parent=0
    _
  %s15 = ssub.s32 1, %s13
  %s16 = scalar_select 0, %s15, %s13
  $region1: #{tpu_custom_call.1} parent=0
    #allocation2 [shape = 'u8[49152]{0}', space=vmem, size = 0xc000, scoped, tag = 'input window, operand 10, single buffered']
    #allocation3 [shape = 's32[1]{0}', space=sflag, size = 0x4, scoped, tag = 'scoped memory for tpu_custom_call.1']
    #allocation4 [shape = 's32[1]{0}', space=sflag, size = 0x4, scoped, tag = 'scoped memory for tpu_custom_call.1']
    #allocation5 [shape = 'u8[8192]{0}', space=vmem, size = 0x2000, scoped, tag = 'output window, operand 0, single buffered']
    %17 = vsyncpa [#allocation3], 0
    %18 = vsyncpa [#allocation4], 0
    // Predicated region
    $region2: #{tpu_custom_call.1} parent=1 // pred_check
      _
    $region3: #{tpu_custom_call.1} parent=1 // pred_check_branch
      %20 = sbr.rel (0) target = $region5
    $region4: #{tpu_custom_call.1} parent=1 // pred_region
      _
    $region5: #{tpu_custom_call.1} parent=1 // pred_fallthru
      _
    // Predicated region
    $region6: #{tpu_custom_call.1} parent=1 // pred_check
      _
    $region7: #{tpu_custom_call.1} parent=1 // pred_check_branch
      %22 = sbr.rel (0) target = $region9
    $region8: #{tpu_custom_call.1} parent=1 // pred_region
      _
    $region9: #{tpu_custom_call.1} parent=1 // pred_fallthru
      _
    // Predicated region
    $region10: #{tpu_custom_call.1} parent=1 // pred_check
      _
    $region11: #{tpu_custom_call.1} parent=1 // pred_check_branch
      %24 = sbr.rel (0) target = $region13
    $region12: #{tpu_custom_call.1} parent=1 // pred_region
      _
    $region13: #{tpu_custom_call.1} parent=1 // pred_fallthru
      _
    // Predicated region
    $region14: #{tpu_custom_call.1} parent=1 // pred_check
      _
    $region15: #{tpu_custom_call.1} parent=1 // pred_check_branch
      %26 = sbr.rel (0) target = $region17
    $region16: #{tpu_custom_call.1} parent=1 // pred_region
      _
    $region17: #{tpu_custom_call.1} parent=1 // pred_fallthru
      _
    // Predicated region
    $region18: #{tpu_custom_call.1} parent=1 // pred_check
      _
    $region19: #{tpu_custom_call.1} parent=1 // pred_check_branch
      %28 = sbr.rel (0) target = $region21
    $region20: #{tpu_custom_call.1} parent=1 // pred_region
      _
    $region21: #{tpu_custom_call.1} parent=1 // pred_fallthru
      _
    // Predicated region
    $region22: #{tpu_custom_call.1} parent=1 // pred_check
      _
    $region23: #{tpu_custom_call.1} parent=1 // pred_check_branch
      %30 = sbr.rel (0) target = $region25
    $region24: #{tpu_custom_call.1} parent=1 // pred_region
      _
    $region25: #{tpu_custom_call.1} parent=1 // pred_fallthru
      _
    // Predicated region
    $region26: #{tpu_custom_call.1} parent=1 // pred_check
      _
    $region27: #{tpu_custom_call.1} parent=1 // pred_check_branch
      %32 = sbr.rel (0) target = $region29
    $region28: #{tpu_custom_call.1} parent=1 // pred_region
      _
    $region29: #{tpu_custom_call.1} parent=1 // pred_fallthru
      _
    // Predicated region
    $region30: #{tpu_custom_call.1} parent=1 // pred_check
      _
    $region31: #{tpu_custom_call.1} parent=1 // pred_check_branch
      %34 = sbr.rel (0) target = $region33
    $region32: #{tpu_custom_call.1} parent=1 // pred_region
      _
    $region33: #{tpu_custom_call.1} parent=1 // pred_fallthru
      _
    // Predicated region
    $region34: #{tpu_custom_call.1} parent=1 // pred_check
      _
    $region35: #{tpu_custom_call.1} parent=1 // pred_check_branch
      %36 = sbr.rel (0) target = $region37
    $region36: #{tpu_custom_call.1} parent=1 // pred_region
      _
    $region37: #{tpu_custom_call.1} parent=1 // pred_fallthru
      _
    // Predicated region
    $region38: #{tpu_custom_call.1} parent=1 // pred_check
      _
    $region39: #{tpu_custom_call.1} parent=1 // pred_check_branch
      %38 = sbr.rel (0) target = $region41
    $region40: #{tpu_custom_call.1} parent=1 // pred_region
      _
    $region41: #{tpu_custom_call.1} parent=1 // pred_fallthru
      _
    // Predicated region
    $region42: #{tpu_custom_call.1} parent=1 // pred_check
      _
    $region43: #{tpu_custom_call.1} parent=1 // pred_check_branch
      %40 = sbr.rel (0) target = $region45
    $region44: #{tpu_custom_call.1} parent=1 // pred_region
      %s42 = ssub.s32 1536, 1536
      %43 = vsyncadd [#allocation3], %s42
      %s44 = sshll.u32 [#allocation2], 4
      %s45 = int_to_ptr.vmem [resolvable:$true] %s44
      %50 = dma.hbm_to_vmem [thread:$0]  %s10, 1536, %s45, [#allocation3], 64, 64, 4
    $region45: #{tpu_custom_call.1} parent=1 // pred_fallthru
      _
    // Predicated region
    $region46: #{tpu_custom_call.1} parent=1 // pred_check
      _
    $region47: #{tpu_custom_call.1} parent=1 // pred_check_branch
      %52 = sbr.rel (0) target = $region49
    $region48: #{tpu_custom_call.1} parent=1 // pred_region
      _
    $region49: #{tpu_custom_call.1} parent=1 // pred_fallthru
      _
    // Predicated region
    $region50: #{tpu_custom_call.1} parent=1 // pred_check
      _
    $region51: #{tpu_custom_call.1} parent=1 // pred_check_branch
      %54 = sbr.rel (0) target = $region53
    $region52: #{tpu_custom_call.1} parent=1 // pred_region
      %55 = dma.done [#allocation3], 1536
    $region53: #{tpu_custom_call.1} parent=1 // pred_fallthru
      _
    %v57 = vld [vmem:[%s0] sm:$0xff]
    %v58 = vld [vmem:[%s0 + $0x8] sm:$0xf]
    %v59 = vpack.c.bf16 %v58, %v57
    %v60 = vld [vmem:[%s1] sm:$0x3]
    %v61 = vld [vmem:[%s1 + $0x2] sm:$0x1]
    %v62 = vunpack.c.0.s8 %v60
    %v63 = vunpack.c.0.s8 %v61
    %v64 = vcvt.s32.f32 %v62
    %v65 = vcvt.s32.f32 %v63
    %vm66 = vcmp.gt.f32.partialorder %v64, 0.0
    %vm67 = vcmp.gt.f32.partialorder %v65, 0.0
    %v68 = vsel %vm66, 0.0, -1e+30
    %v69 = vsel %vm67, 0.0, -1e+30
    %v70 = vlaneseq
    %v71 = vshrl.u32 %v70, 7
    %v72 = vlaneseq
    %v73 = vand.u32 %v72, 127
    %vm74 = vcmp.eq.s32.totalorder %v71, %v73
    %v75 = vsel %vm74, 1, 0
    %v76 = vcvt.s32.f32 %v75
    %v77 = vld [vmem:[%s2] sm:$0xff]
    %v78 = vld [vmem:[%s2 + $0x8] sm:$0xff]
    %v81 = vunpack.c.l.b16 %v77
    %v82 = vunpack.c.h.b16 %v77
    %v83 = vunpack.c.l.b16 %v78
    %v84 = vunpack.c.h.b16 %v78
    %v85 = vpack.c.b16 %v81, %v81
    %v86 = vpack.c.b16 %v82, %v82
    %v87 = vpack.c.b16 %v83, %v83
    %v88 = vpack.c.b16 %v84, %v84
    %vm89 = vcmask 64512
    %v91 = vsel %vm89, %v59, 0
    %vm93 = vcmask 1043456
    %v95 = vsel %vm93, %v85, 0
    %v98 = vsel %vm93, %v86, 0
    %v101 = vsel %vm93, %v87, 0
    %v104 = vsel %vm93, %v88, 0
    %106 = vmatprep.subr.bf16.mxu0 0
    %107 = vmatpush1.bf16.msra.mxu0 0
    %108 = vmatprep.subr.bf16.mxu0 0
    %109 = vmatpush1.bf16.msra.mxu0 0
    %110 = vmatprep.subr.bf16.mxu0 0
    %111 = vmatpush1.bf16.msra.mxu0 0
    %112 = vmatprep.subr.bf16.mxu0 0
    %113 = vmatpush1.bf16.msra.mxu0 0
    %114 = vmatprep.subr.bf16.mxu0 0
    %115 = vmatpush1.bf16.msra.mxu0 0
    %116 = vmatprep.subr.bf16.mxu0 0
    %117 = vmatpush1.bf16.msra.mxu0 0
    %118 = vmatprep.subr.bf16.mxu0 0
    %119 = vmatpush1.bf16.msra.mxu0 0
    %120 = vmatprep.subr.bf16.mxu0 %v98
    %121 = vmatpush1.bf16.msra.mxu0 %v95
    %122 = vmatprep.subr.bf16.mxu0 0
    %123 = vmatpush2.bf16.msra.mxu0 0
    %124 = vmatprep.subr.bf16.mxu0 0
    %125 = vmatpush2.bf16.msra.mxu0 0
    %126 = vmatprep.subr.bf16.mxu0 0
    %127 = vmatpush2.bf16.msra.mxu0 0
    %128 = vmatprep.subr.bf16.mxu0 0
    %129 = vmatpush2.bf16.msra.mxu0 0
    %130 = vmatprep.subr.bf16.mxu0 0
    %131 = vmatpush2.bf16.msra.mxu0 0
    %132 = vmatprep.subr.bf16.mxu0 0
    %133 = vmatpush2.bf16.msra.mxu0 0
    %134 = vmatprep.subr.bf16.mxu0 0
    %135 = vmatpush2.bf16.msra.mxu0 0
    %136 = vmatprep.subr.bf16.mxu0 0
    %137 = vmatpush2.bf16.msra.mxu0 0
    %138 = vmatprep.mubr.bf16.mxu0 0
    %139 = vmatmul.mubr.bf16.gmra.mxu0 %v91
    %v140 = vpop.f32.mrf.mxu0
    %v141 = vadd.f32 0.0, %v140
    %v142 = vpop.f32.mrf.mxu0
    %v143 = vadd.f32 0.0, %v142
    %v144 = vpop.f32.mrf.mxu0
    %v145 = vadd.f32 0.0, %v144
    %v146 = vpop.f32.mrf.mxu0
    %v147 = vadd.f32 0.0, %v146
    %148 = vdwg.mxu0
    %149 = vmatprep.subr.bf16.mxu0 0
    %150 = vmatpush1.bf16.msra.mxu0 0
    %151 = vmatprep.subr.bf16.mxu0 0
    %152 = vmatpush1.bf16.msra.mxu0 0
    %153 = vmatprep.subr.bf16.mxu0 0
    %154 = vmatpush1.bf16.msra.mxu0 0
    %155 = vmatprep.subr.bf16.mxu0 0
    %156 = vmatpush1.bf16.msra.mxu0 0
    %157 = vmatprep.subr.bf16.mxu0 0
    %158 = vmatpush1.bf16.msra.mxu0 0
    %159 = vmatprep.subr.bf16.mxu0 0
    %160 = vmatpush1.bf16.msra.mxu0 0
    %161 = vmatprep.subr.bf16.mxu0 0
    %162 = vmatpush1.bf16.msra.mxu0 0
    %163 = vmatprep.subr.bf16.mxu0 %v104
    %164 = vmatpush1.bf16.msra.mxu0 %v101
    %165 = vmatprep.subr.bf16.mxu0 0
    %166 = vmatpush2.bf16.msra.mxu0 0
    %167 = vmatprep.subr.bf16.mxu0 0
    %168 = vmatpush2.bf16.msra.mxu0 0
    %169 = vmatprep.subr.bf16.mxu0 0
    %170 = vmatpush2.bf16.msra.mxu0 0
    %171 = vmatprep.subr.bf16.mxu0 0
    %172 = vmatpush2.bf16.msra.mxu0 0
    %173 = vmatprep.subr.bf16.mxu0 0
    %174 = vmatpush2.bf16.msra.mxu0 0
    %175 = vmatprep.subr.bf16.mxu0 0
    %176 = vmatpush2.bf16.msra.mxu0 0
    %177 = vmatprep.subr.bf16.mxu0 0
    %178 = vmatpush2.bf16.msra.mxu0 0
    %179 = vmatprep.subr.bf16.mxu0 0
    %180 = vmatpush2.bf16.msra.mxu0 0
    %181 = vmatprep.mubr.bf16.mxu0 0
    %182 = vmatmul.mubr.bf16.gmra.mxu0 %v91
    %v183 = vpop.f32.mrf.mxu0
    %v184 = vadd.f32 0.0, %v183
    %v185 = vpop.f32.mrf.mxu0
    %v186 = vadd.f32 0.0, %v185
    %v187 = vpop.f32.mrf.mxu0
    %v188 = vadd.f32 0.0, %v187
    %v189 = vpop.f32.mrf.mxu0
    %v190 = vadd.f32 0.0, %v189
    %191 = vdwg.mxu0
    %v192 = vpack.c.bf16 %v145, %v141
    %v193 = vpack.c.bf16 %v147, %v143
    %v194 = vpack.c.bf16 %v188, %v184
    %v195 = vpack.c.bf16 %v190, %v186
    %v196 = vld [vmem:[%s3] sm:$0xf]
    %v198 = vsel %vm93, %v196, 0
    %200 = vmatprep.subr.bf16.mxu0 0
    %201 = vmatpush1.bf16.msra.mxu0 0
    %202 = vmatprep.subr.bf16.mxu0 0
    %203 = vmatpush1.bf16.msra.mxu0 0
    %204 = vmatprep.subr.bf16.mxu0 0
    %205 = vmatpush1.bf16.msra.mxu0 0
    %206 = vmatprep.subr.bf16.mxu0 0
    %207 = vmatpush1.bf16.msra.mxu0 0
    %208 = vmatprep.subr.bf16.mxu0 0
    %209 = vmatpush1.bf16.msra.mxu0 0
    %210 = vmatprep.subr.bf16.mxu0 0
    %211 = vmatpush1.bf16.msra.mxu0 0
    %212 = vmatprep.subr.bf16.mxu0 0
    %213 = vmatpush1.bf16.msra.mxu0 0
    %214 = vmatprep.subr.bf16.mxu0 0
    %215 = vmatpush1.bf16.msra.mxu0 %v198
    %216 = vmatprep.subr.bf16.mxu0 0
    %217 = vmatpush2.bf16.msra.mxu0 0
    %218 = vmatprep.subr.bf16.mxu0 0
    %219 = vmatpush2.bf16.msra.mxu0 0
    %220 = vmatprep.subr.bf16.mxu0 0
    %221 = vmatpush2.bf16.msra.mxu0 0
    %222 = vmatprep.subr.bf16.mxu0 0
    %223 = vmatpush2.bf16.msra.mxu0 0
    %224 = vmatprep.subr.bf16.mxu0 0
    %225 = vmatpush2.bf16.msra.mxu0 0
    %226 = vmatprep.subr.bf16.mxu0 0
    %227 = vmatpush2.bf16.msra.mxu0 0
    %228 = vmatprep.subr.bf16.mxu0 0
    %229 = vmatpush2.bf16.msra.mxu0 0
    %230 = vmatprep.subr.bf16.mxu0 0
    %231 = vmatpush2.bf16.msra.mxu0 0
    %232 = vmatprep.mubr.bf16.mxu0 0
    %233 = vmatmul.mubr.bf16.gmra.mxu0 %v91
    %v234 = vpop.f32.mrf.mxu0
    %v235 = vadd.f32 0.0, %v234
    %v236 = vpop.f32.mrf.mxu0
    %v237 = vpop.f32.mrf.mxu0
    %v238 = vadd.f32 0.0, %v237
    %v239 = vpop.f32.mrf.mxu0
    %240 = vdwg.mxu0
    %vm241 = vcmask 31744
    %v243 = vsel %vm241, %v76, 0
    %v246 = vsel %vm241, %v235, 0
    %v249 = vsel %vm241, %v238, 0
    %251 = vmatprep.subr.mxu0 0.0
    %252 = vmatpush1.xpose.msra.mxu0 0.0
    %253 = vmatprep.subr.mxu0 0.0
    %254 = vmatpush1.xpose.msra.mxu0 0.0
    %255 = vmatprep.subr.mxu0 0.0
    %256 = vmatpush1.xpose.msra.mxu0 0.0
    %257 = vmatprep.subr.mxu0 0.0
    %258 = vmatpush1.xpose.msra.mxu0 0.0
    %259 = vmatprep.subr.mxu0 0.0
    %260 = vmatpush1.xpose.msra.mxu0 0.0
    %261 = vmatprep.subr.mxu0 0.0
    %262 = vmatpush1.xpose.msra.mxu0 0.0
    %263 = vmatprep.subr.mxu0 0.0
    %264 = vmatpush1.xpose.msra.mxu0 0.0
    %265 = vmatprep.subr.mxu0 0.0
    %266 = vmatpush1.xpose.msra.mxu0 0.0
    %267 = vmatprep.subr.mxu0 0.0
    %268 = vmatpush1.xpose.msra.mxu0 0.0
    %269 = vmatprep.subr.mxu0 0.0
    %270 = vmatpush1.xpose.msra.mxu0 0.0
    %271 = vmatprep.subr.mxu0 0.0
    %272 = vmatpush1.xpose.msra.mxu0 0.0
    %273 = vmatprep.subr.mxu0 0.0
    %274 = vmatpush1.xpose.msra.mxu0 0.0
    %275 = vmatprep.subr.mxu0 0.0
    %276 = vmatpush1.xpose.msra.mxu0 0.0
    %277 = vmatprep.subr.mxu0 0.0
    %278 = vmatpush1.xpose.msra.mxu0 0.0
    %279 = vmatprep.subr.mxu0 0.0
    %280 = vmatpush1.xpose.msra.mxu0 %v249
    %281 = vmatprep.subr.mxu0 0.0
    %282 = vmatpush1.xpose.msra.mxu0 %v246
    %283 = vmatprep.subr.mxu0 0.0
    %284 = vmatpush2.xpose.msra.mxu0 0.0
    %285 = vmatprep.subr.mxu0 0.0
    %286 = vmatpush2.xpose.msra.mxu0 0.0
    %287 = vmatprep.subr.mxu0 0.0
    %288 = vmatpush2.xpose.msra.mxu0 0.0
    %289 = vmatprep.subr.mxu0 0.0
    %290 = vmatpush2.xpose.msra.mxu0 0.0
    %291 = vmatprep.subr.mxu0 0.0
    %292 = vmatpush2.xpose.msra.mxu0 0.0
    %293 = vmatprep.subr.mxu0 0.0
    %294 = vmatpush2.xpose.msra.mxu0 0.0
    %295 = vmatprep.subr.mxu0 0.0
    %296 = vmatpush2.xpose.msra.mxu0 0.0
    %297 = vmatprep.subr.mxu0 0.0
    %298 = vmatpush2.xpose.msra.mxu0 0.0
    %299 = vmatprep.subr.mxu0 0.0
    %300 = vmatpush2.xpose.msra.mxu0 0.0
    %301 = vmatprep.subr.mxu0 0.0
    %302 = vmatpush2.xpose.msra.mxu0 0.0
    %303 = vmatprep.subr.mxu0 0.0
    %304 = vmatpush2.xpose.msra.mxu0 0.0
    %305 = vmatprep.subr.mxu0 0.0
    %306 = vmatpush2.xpose.msra.mxu0 0.0
    %307 = vmatprep.subr.mxu0 0.0
    %308 = vmatpush2.xpose.msra.mxu0 0.0
    %309 = vmatprep.subr.mxu0 0.0
    %310 = vmatpush2.xpose.msra.mxu0 0.0
    %311 = vmatprep.subr.mxu0 0.0
    %312 = vmatpush2.xpose.msra.mxu0 0.0
    %313 = vmatprep.subr.mxu0 0.0
    %314 = vmatpush2.xpose.msra.mxu0 0.0
    %315 = vmatprep.mubr.f32.mxu0 0.0
    %316 = vmatmul.mubr.f32.gmra.mxu0 %v243
    %v317 = vpop.f32.mrf.mxu0
    %v318 = vadd.f32 0.0, %v317
    %v319 = vpop.f32.mrf.mxu0
    %320 = vdwg.mxu0
    %321 = vset.pattern.permute.xlu0 4
    %322 = vperm.xlu0 %321, %v235
    %v323 = vpop.permute.xlu0 %322
    %325 = vset.pattern.permute.xlu0 4
    %326 = vperm.xlu0 %325, %v238
    %v327 = vpop.permute.xlu0 %326
    %v329 = vlaneseq
    %v330 = vshrl.u32 %v329, 7
    %v331 = vsub.s32 0, %v330
    %v332 = vrot.slane %v318, %v331
    %v333 = vadd.f32 %v323, %v332
    %v334 = vadd.f32 %v327, %v332
    %vm335 = vcmp.gt.f32.partialorder %v333, 0.0
    %vm336 = vcmp.gt.f32.partialorder %v334, 0.0
    %v337 = vmul.f32 %v333, 0.2
    %v338 = vmul.f32 %v334, 0.2
    %v339 = vsel %vm335, %v333, %v337
    %v340 = vsel %vm336, %v334, %v338
    %v341 = vadd.f32 %v339, %v68
    %v342 = vadd.f32 %v340, %v69
    %vm343 = vcmask 97280
    %v344 = vsel %vm343, %v341, -inf
    %345 = vmax.xlane.f32.xlu0 %v344
    %v346 = vpop.xlane.xlu0 %345
    %vm347 = vcmask 93184
    %v348 = vsel %vm347, %v342, -inf
    %349 = vmax.xlane.f32.xlu0 %v348
    %v350 = vpop.xlane.xlu0 %349
    %v351 = vsub.f32 %v341, %v346
    %v352 = vsub.f32 %v342, %v350
    %v353 = vmul.f32 %v351, 1.442695
    %v354 = vpow.pop %v353
    %v355 = vmul.f32 %v352, 1.442695
    %v356 = vpow.pop %v355
    %v357 = vsel %vm343, %v354, 0.0
    %358 = vadd.xlane.f32.xlu0 %v357
    %v359 = vpop.xlane.xlu0 %358
    %v360 = vsel %vm347, %v356, 0.0
    %361 = vadd.xlane.f32.xlu0 %v360
    %v362 = vpop.xlane.xlu0 %361
    %v363 = vrcp.pop %v359
    %v364 = vrcp.pop %v362
    %v365 = vmul.f32 %v354, %v363
    %v366 = vmul.f32 %v356, %v364
    %v367 = vpack.c.bf16 %v366, %v365
    %368 = vset.pattern.permute.xlu0 5
    %369 = vperm.xlu0 %368, %v235
    %v370 = vpop.permute.xlu0 %369
    %372 = vset.pattern.permute.xlu0 5
    %373 = vperm.xlu0 %372, %v238
    %v374 = vpop.permute.xlu0 %373
    %v376 = vlaneseq
    %v377 = vshrl.u32 %v376, 7
    %v378 = vsub.s32 1, %v377
    %v379 = vrot.slane %v318, %v378
    %v380 = vadd.f32 %v370, %v379
    %v381 = vadd.f32 %v374, %v379
    %vm382 = vcmp.gt.f32.partialorder %v380, 0.0
    %vm383 = vcmp.gt.f32.partialorder %v381, 0.0
    %v384 = vmul.f32 %v380, 0.2
    %v385 = vmul.f32 %v381, 0.2
    %v386 = vsel %vm382, %v380, %v384
    %v387 = vsel %vm383, %v381, %v385
    %v388 = vadd.f32 %v386, %v68
    %v389 = vadd.f32 %v387, %v69
    %v390 = vsel %vm343, %v388, -inf
    %391 = vmax.xlane.f32.xlu0 %v390
    %v392 = vpop.xlane.xlu0 %391
    %v393 = vsel %vm347, %v389, -inf
    %394 = vmax.xlane.f32.xlu0 %v393
    %v395 = vpop.xlane.xlu0 %394
    %v396 = vsub.f32 %v388, %v392
    %v397 = vsub.f32 %v389, %v395
    %v398 = vmul.f32 %v396, 1.442695
    %v399 = vpow.pop %v398
    %v400 = vmul.f32 %v397, 1.442695
    %v401 = vpow.pop %v400
    %v402 = vsel %vm343, %v399, 0.0
    %403 = vadd.xlane.f32.xlu0 %v402
    %v404 = vpop.xlane.xlu0 %403
    %v405 = vsel %vm347, %v401, 0.0
    %406 = vadd.xlane.f32.xlu0 %v405
    %v407 = vpop.xlane.xlu0 %406
    %v408 = vrcp.pop %v404
    %v409 = vrcp.pop %v407
    %v410 = vmul.f32 %v399, %v408
    %v411 = vmul.f32 %v401, %v409
    %v412 = vpack.c.bf16 %v411, %v410
    %v414 = vsel %vm343, %v412, 0
    %vm416 = vcmask 1045504
    %v418 = vsel %vm416, %v193, 0
    %420 = vmatprep.subr.bf16.mxu0 0
    %421 = vmatpush1.bf16.msra.mxu0 0
    %422 = vmatprep.subr.bf16.mxu0 0
    %423 = vmatpush1.bf16.msra.mxu0 0
    %424 = vmatprep.subr.bf16.mxu0 0
    %425 = vmatpush1.bf16.msra.mxu0 0
    %426 = vmatprep.subr.bf16.mxu0 0
    %427 = vmatpush1.bf16.msra.mxu0 0
    %428 = vmatprep.subr.bf16.mxu0 0
    %429 = vmatpush1.bf16.msra.mxu0 0
    %430 = vmatprep.subr.bf16.mxu0 0
    %431 = vmatpush1.bf16.msra.mxu0 0
    %432 = vmatprep.subr.bf16.mxu0 0
    %433 = vmatpush1.bf16.msra.mxu0 0
    %434 = vmatprep.subr.bf16.mxu0 0
    %435 = vmatpush1.bf16.msra.mxu0 %v418
    %436 = vmatprep.subr.bf16.mxu0 0
    %437 = vmatpush2.bf16.msra.mxu0 0
    %438 = vmatprep.subr.bf16.mxu0 0
    %439 = vmatpush2.bf16.msra.mxu0 0
    %440 = vmatprep.subr.bf16.mxu0 0
    %441 = vmatpush2.bf16.msra.mxu0 0
    %442 = vmatprep.subr.bf16.mxu0 0
    %443 = vmatpush2.bf16.msra.mxu0 0
    %444 = vmatprep.subr.bf16.mxu0 0
    %445 = vmatpush2.bf16.msra.mxu0 0
    %446 = vmatprep.subr.bf16.mxu0 0
    %447 = vmatpush2.bf16.msra.mxu0 0
    %448 = vmatprep.subr.bf16.mxu0 0
    %449 = vmatpush2.bf16.msra.mxu0 0
    %450 = vmatprep.subr.bf16.mxu0 0
    %451 = vmatpush2.bf16.msra.mxu0 0
    %452 = vmatprep.mubr.bf16.mxu0 0
    %453 = vmatmul.mubr.bf16.gmra.mxu0 %v414
    %v454 = vpop.f32.mrf.mxu0
    %v455 = vadd.f32 0.0, %v454
    %v456 = vpop.f32.mrf.mxu0
    %v457 = vpop.f32.mrf.mxu0
    %v458 = vadd.f32 0.0, %v457
    %v459 = vpop.f32.mrf.mxu0
    %460 = vdwg.mxu0
    %v462 = vsel %vm343, %v367, 0
    %v465 = vsel %vm416, %v192, 0
    %467 = vmatprep.subr.bf16.mxu0 0
    %468 = vmatpush1.bf16.msra.mxu0 0
    %469 = vmatprep.subr.bf16.mxu0 0
    %470 = vmatpush1.bf16.msra.mxu0 0
    %471 = vmatprep.subr.bf16.mxu0 0
    %472 = vmatpush1.bf16.msra.mxu0 0
    %473 = vmatprep.subr.bf16.mxu0 0
    %474 = vmatpush1.bf16.msra.mxu0 0
    %475 = vmatprep.subr.bf16.mxu0 0
    %476 = vmatpush1.bf16.msra.mxu0 0
    %477 = vmatprep.subr.bf16.mxu0 0
    %478 = vmatpush1.bf16.msra.mxu0 0
    %479 = vmatprep.subr.bf16.mxu0 0
    %480 = vmatpush1.bf16.msra.mxu0 0
    %481 = vmatprep.subr.bf16.mxu0 0
    %482 = vmatpush1.bf16.msra.mxu0 %v465
    %483 = vmatprep.subr.bf16.mxu0 0
    %484 = vmatpush2.bf16.msra.mxu0 0
    %485 = vmatprep.subr.bf16.mxu0 0
    %486 = vmatpush2.bf16.msra.mxu0 0
    %487 = vmatprep.subr.bf16.mxu0 0
    %488 = vmatpush2.bf16.msra.mxu0 0
    %489 = vmatprep.subr.bf16.mxu0 0
    %490 = vmatpush2.bf16.msra.mxu0 0
    %491 = vmatprep.subr.bf16.mxu0 0
    %492 = vmatpush2.bf16.msra.mxu0 0
    %493 = vmatprep.subr.bf16.mxu0 0
    %494 = vmatpush2.bf16.msra.mxu0 0
    %495 = vmatprep.subr.bf16.mxu0 0
    %496 = vmatpush2.bf16.msra.mxu0 0
    %497 = vmatprep.subr.bf16.mxu0 0
    %498 = vmatpush2.bf16.msra.mxu0 0
    %499 = vmatprep.mubr.bf16.mxu0 0
    %500 = vmatmul.mubr.bf16.gmra.mxu0 %v462
    %v501 = vpop.f32.mrf.mxu0
    %v502 = vadd.f32 %v455, %v501
    %v503 = vpop.f32.mrf.mxu0
    %v504 = vpop.f32.mrf.mxu0
    %v505 = vadd.f32 %v458, %v504
    %v506 = vpop.f32.mrf.mxu0
    %507 = vdwg.mxu0
    %508 = vset.pattern.permute.xlu0 6
    %509 = vperm.xlu0 %508, %v235
    %v510 = vpop.permute.xlu0 %509
    %512 = vset.pattern.permute.xlu0 6
    %513 = vperm.xlu0 %512, %v238
    %v514 = vpop.permute.xlu0 %513
    %v516 = vlaneseq
    %v517 = vshrl.u32 %v516, 7
    %v518 = vsub.s32 2, %v517
    %v519 = vrot.slane %v318, %v518
    %v520 = vadd.f32 %v510, %v519
    %v521 = vadd.f32 %v514, %v519
    %vm522 = vcmp.gt.f32.partialorder %v520, 0.0
    %vm523 = vcmp.gt.f32.partialorder %v521, 0.0
    %v524 = vmul.f32 %v520, 0.2
    %v525 = vmul.f32 %v521, 0.2
    %v526 = vsel %vm522, %v520, %v524
    %v527 = vsel %vm523, %v521, %v525
    %v528 = vadd.f32 %v526, %v68
    %v529 = vadd.f32 %v527, %v69
    %v530 = vsel %vm343, %v528, -inf
    %531 = vmax.xlane.f32.xlu0 %v530
    %v532 = vpop.xlane.xlu0 %531
    %v533 = vsel %vm347, %v529, -inf
    %534 = vmax.xlane.f32.xlu0 %v533
    %v535 = vpop.xlane.xlu0 %534
    %v536 = vsub.f32 %v528, %v532
    %v537 = vsub.f32 %v529, %v535
    %v538 = vmul.f32 %v536, 1.442695
    %v539 = vpow.pop %v538
    %v540 = vmul.f32 %v537, 1.442695
    %v541 = vpow.pop %v540
    %v542 = vsel %vm343, %v539, 0.0
    %543 = vadd.xlane.f32.xlu0 %v542
    %v544 = vpop.xlane.xlu0 %543
    %v545 = vsel %vm347, %v541, 0.0
    %546 = vadd.xlane.f32.xlu0 %v545
    %v547 = vpop.xlane.xlu0 %546
    %v548 = vrcp.pop %v544
    %v549 = vrcp.pop %v547
    %v550 = vmul.f32 %v539, %v548
    %v551 = vmul.f32 %v541, %v549
    %v552 = vpack.c.bf16 %v551, %v550
    %v554 = vsel %vm343, %v552, 0
    %v557 = vsel %vm416, %v194, 0
    %559 = vmatprep.subr.bf16.mxu0 0
    %560 = vmatpush1.bf16.msra.mxu0 0
    %561 = vmatprep.subr.bf16.mxu0 0
    %562 = vmatpush1.bf16.msra.mxu0 0
    %563 = vmatprep.subr.bf16.mxu0 0
    %564 = vmatpush1.bf16.msra.mxu0 0
    %565 = vmatprep.subr.bf16.mxu0 0
    %566 = vmatpush1.bf16.msra.mxu0 0
    %567 = vmatprep.subr.bf16.mxu0 0
    %568 = vmatpush1.bf16.msra.mxu0 0
    %569 = vmatprep.subr.bf16.mxu0 0
    %570 = vmatpush1.bf16.msra.mxu0 0
    %571 = vmatprep.subr.bf16.mxu0 0
    %572 = vmatpush1.bf16.msra.mxu0 0
    %573 = vmatprep.subr.bf16.mxu0 0
    %574 = vmatpush1.bf16.msra.mxu0 %v557
    %575 = vmatprep.subr.bf16.mxu0 0
    %576 = vmatpush2.bf16.msra.mxu0 0
    %577 = vmatprep.subr.bf16.mxu0 0
    %578 = vmatpush2.bf16.msra.mxu0 0
    %579 = vmatprep.subr.bf16.mxu0 0
    %580 = vmatpush2.bf16.msra.mxu0 0
    %581 = vmatprep.subr.bf16.mxu0 0
    %582 = vmatpush2.bf16.msra.mxu0 0
    %583 = vmatprep.subr.bf16.mxu0 0
    %584 = vmatpush2.bf16.msra.mxu0 0
    %585 = vmatprep.subr.bf16.mxu0 0
    %586 = vmatpush2.bf16.msra.mxu0 0
    %587 = vmatprep.subr.bf16.mxu0 0
    %588 = vmatpush2.bf16.msra.mxu0 0
    %589 = vmatprep.subr.bf16.mxu0 0
    %590 = vmatpush2.bf16.msra.mxu0 0
    %591 = vmatprep.mubr.bf16.mxu0 0
    %592 = vmatmul.mubr.bf16.gmra.mxu0 %v554
    %v593 = vpop.f32.mrf.mxu0
    %v594 = vadd.f32 0.0, %v593
    %v595 = vpop.f32.mrf.mxu0
    %v596 = vpop.f32.mrf.mxu0
    %v597 = vadd.f32 0.0, %v596
    %v598 = vpop.f32.mrf.mxu0
    %599 = vdwg.mxu0
    %v600 = vadd.f32 %v502, %v594
    %v601 = vadd.f32 %v505, %v597
    %602 = vset.pattern.permute.xlu0 7
    %603 = vperm.xlu0 %602, %v235
    %v604 = vpop.permute.xlu0 %603
    %606 = vset.pattern.permute.xlu0 7
    %607 = vperm.xlu0 %606, %v238
    %v608 = vpop.permute.xlu0 %607
    %v610 = vlaneseq
    %v611 = vshrl.u32 %v610, 7
    %v612 = vsub.s32 3, %v611
    %v613 = vrot.slane %v318, %v612
    %v614 = vadd.f32 %v604, %v613
    %v615 = vadd.f32 %v608, %v613
    %vm616 = vcmp.gt.f32.partialorder %v614, 0.0
    %vm617 = vcmp.gt.f32.partialorder %v615, 0.0
    %v618 = vmul.f32 %v614, 0.2
    %v619 = vmul.f32 %v615, 0.2
    %v620 = vsel %vm616, %v614, %v618
    %v621 = vsel %vm617, %v615, %v619
    %v622 = vadd.f32 %v620, %v68
    %v623 = vadd.f32 %v621, %v69
    %v624 = vsel %vm343, %v622, -inf
    %625 = vmax.xlane.f32.xlu0 %v624
    %v626 = vpop.xlane.xlu0 %625
    %v627 = vsel %vm347, %v623, -inf
    %628 = vmax.xlane.f32.xlu0 %v627
    %v629 = vpop.xlane.xlu0 %628
    %v630 = vsub.f32 %v622, %v626
    %v631 = vsub.f32 %v623, %v629
    %v632 = vmul.f32 %v630, 1.442695
    %v633 = vpow.pop %v632
    %v634 = vmul.f32 %v631, 1.442695
    %v635 = vpow.pop %v634
    %v636 = vsel %vm343, %v633, 0.0
    %637 = vadd.xlane.f32.xlu0 %v636
    %v638 = vpop.xlane.xlu0 %637
    %v639 = vsel %vm347, %v635, 0.0
    %640 = vadd.xlane.f32.xlu0 %v639
    %v641 = vpop.xlane.xlu0 %640
    %v642 = vrcp.pop %v638
    %v643 = vrcp.pop %v641
    %v644 = vmul.f32 %v633, %v642
    %v645 = vmul.f32 %v635, %v643
    %v646 = vpack.c.bf16 %v645, %v644
    %v648 = vsel %vm343, %v646, 0
    %v651 = vsel %vm416, %v195, 0
    %653 = vmatprep.subr.bf16.mxu0 0
    %654 = vmatpush1.bf16.msra.mxu0 0
    %655 = vmatprep.subr.bf16.mxu0 0
    %656 = vmatpush1.bf16.msra.mxu0 0
    %657 = vmatprep.subr.bf16.mxu0 0
    %658 = vmatpush1.bf16.msra.mxu0 0
    %659 = vmatprep.subr.bf16.mxu0 0
    %660 = vmatpush1.bf16.msra.mxu0 0
    %661 = vmatprep.subr.bf16.mxu0 0
    %662 = vmatpush1.bf16.msra.mxu0 0
    %663 = vmatprep.subr.bf16.mxu0 0
    %664 = vmatpush1.bf16.msra.mxu0 0
    %665 = vmatprep.subr.bf16.mxu0 0
    %666 = vmatpush1.bf16.msra.mxu0 0
    %667 = vmatprep.subr.bf16.mxu0 0
    %668 = vmatpush1.bf16.msra.mxu0 %v651
    %669 = vmatprep.subr.bf16.mxu0 0
    %670 = vmatpush2.bf16.msra.mxu0 0
    %671 = vmatprep.subr.bf16.mxu0 0
    %672 = vmatpush2.bf16.msra.mxu0 0
    %673 = vmatprep.subr.bf16.mxu0 0
    %674 = vmatpush2.bf16.msra.mxu0 0
    %675 = vmatprep.subr.bf16.mxu0 0
    %676 = vmatpush2.bf16.msra.mxu0 0
    %677 = vmatprep.subr.bf16.mxu0 0
    %678 = vmatpush2.bf16.msra.mxu0 0
    %679 = vmatprep.subr.bf16.mxu0 0
    %680 = vmatpush2.bf16.msra.mxu0 0
    %681 = vmatprep.subr.bf16.mxu0 0
    %682 = vmatpush2.bf16.msra.mxu0 0
    %683 = vmatprep.subr.bf16.mxu0 0
    %684 = vmatpush2.bf16.msra.mxu0 0
    %685 = vmatprep.mubr.bf16.mxu0 0
    %686 = vmatmul.mubr.bf16.gmra.mxu0 %v648
    %v687 = vpop.f32.mrf.mxu0
    %v688 = vadd.f32 0.0, %v687
    %v689 = vpop.f32.mrf.mxu0
    %v690 = vpop.f32.mrf.mxu0
    %v691 = vadd.f32 0.0, %v690
    %v692 = vpop.f32.mrf.mxu0
    %693 = vdwg.mxu0
    %v694 = vadd.f32 %v600, %v688
    %v695 = vadd.f32 %v601, %v691
    %v696 = vmul.f32 %v694, 0.25
    %v697 = vmul.f32 %v695, 0.25
    %v698 = vld [vmem:[%s4] sm:$0x1]
    %v700 = vlaneseq
    %v701 = vshrl.u32 %v700, 7
    %v702 = vsub.s32 0, %v701
    %v703 = vrot.slane %v698, %v702
    %v705 = vadd.f32 %v696, %v703
    %v706 = vadd.f32 %v697, %v703
    %vm707 = vcmp.gt.f32.partialorder %v705, 0.0
    %vm708 = vcmp.gt.f32.partialorder %v706, 0.0
    %v709 = vmin.f32 %v705, 0.0
    %v710 = vmin.f32 %v706, 0.0
    %v711 = vmul.f32 %v709, 1.442695
    %v712 = vpow.pop %v711
    %v713 = vmul.f32 %v710, 1.442695
    %v714 = vpow.pop %v713
    %v715 = vsub.f32 %v712, 1.0
    %v716 = vsub.f32 %v714, 1.0
    %v717 = vsel %vm707, %v705, %v715
    %v718 = vsel %vm708, %v706, %v716
    %v719 = vpack.c.bf16 %v718, %v717
    %v720 = vld [vmem:[%s5] sm:$0xff]
    %v721 = vld [vmem:[%s5 + $0x8] sm:$0xff]
    %v722 = vld [vmem:[%s5 + $0x10] sm:$0xff]
    %v723 = vld [vmem:[%s5 + $0x18] sm:$0xff]
    %v724 = vld [vmem:[%s5 + $0x20] sm:$0xff]
    %v725 = vld [vmem:[%s5 + $0x28] sm:$0xff]
    %v726 = vld [vmem:[%s5 + $0x30] sm:$0xff]
    %v727 = vld [vmem:[%s5 + $0x38] sm:$0xff]
    %v728 = vld [vmem:[%s5 + $0x40] sm:$0xff]
    %v729 = vld [vmem:[%s5 + $0x48] sm:$0xff]
    %v730 = vld [vmem:[%s5 + $0x50] sm:$0xff]
    %v731 = vld [vmem:[%s5 + $0x58] sm:$0xff]
    %v732 = vld [vmem:[%s5 + $0x60] sm:$0xff]
    %v733 = vld [vmem:[%s5 + $0x68] sm:$0xff]
    %v734 = vld [vmem:[%s5 + $0x70] sm:$0xff]
    %v735 = vld [vmem:[%s5 + $0x78] sm:$0xff]
    %v736 = vld [vmem:[%s5 + $0x80] sm:$0xff]
    %v737 = vld [vmem:[%s5 + $0x88] sm:$0xff]
    %v738 = vld [vmem:[%s5 + $0x90] sm:$0xff]
    %v739 = vld [vmem:[%s5 + $0x98] sm:$0xff]
    %v740 = vld [vmem:[%s5 + $0xa0] sm:$0xff]
    %v741 = vld [vmem:[%s5 + $0xa8] sm:$0xff]
    %v742 = vld [vmem:[%s5 + $0xb0] sm:$0xff]
    %v743 = vld [vmem:[%s5 + $0xb8] sm:$0xff]
    %v744 = vld [vmem:[%s5 + $0xc0] sm:$0xff]
    %v745 = vld [vmem:[%s5 + $0xc8] sm:$0xff]
    %v746 = vld [vmem:[%s5 + $0xd0] sm:$0xff]
    %v747 = vld [vmem:[%s5 + $0xd8] sm:$0xff]
    %v748 = vld [vmem:[%s5 + $0xe0] sm:$0xff]
    %v749 = vld [vmem:[%s5 + $0xe8] sm:$0xff]
    %v750 = vld [vmem:[%s5 + $0xf0] sm:$0xff]
    %v751 = vld [vmem:[%s5 + $0xf8] sm:$0xff]
    %v784 = vunpack.c.l.b16 %v720
    %v785 = vunpack.c.h.b16 %v720
    %v786 = vunpack.c.l.b16 %v721
    %v787 = vunpack.c.h.b16 %v721
    %v788 = vunpack.c.l.b16 %v722
    %v789 = vunpack.c.h.b16 %v722
    %v790 = vunpack.c.l.b16 %v723
    %v791 = vunpack.c.h.b16 %v723
    %v792 = vunpack.c.l.b16 %v724
    %v793 = vunpack.c.h.b16 %v724
    %v794 = vunpack.c.l.b16 %v725
    %v795 = vunpack.c.h.b16 %v725
    %v796 = vunpack.c.l.b16 %v726
    %v797 = vunpack.c.h.b16 %v726
    %v798 = vunpack.c.l.b16 %v727
    %v799 = vunpack.c.h.b16 %v727
    %v800 = vunpack.c.l.b16 %v728
    %v801 = vunpack.c.h.b16 %v728
    %v802 = vunpack.c.l.b16 %v729
    %v803 = vunpack.c.h.b16 %v729
    %v804 = vunpack.c.l.b16 %v730
    %v805 = vunpack.c.h.b16 %v730
    %v806 = vunpack.c.l.b16 %v731
    %v807 = vunpack.c.h.b16 %v731
    %v808 = vunpack.c.l.b16 %v732
    %v809 = vunpack.c.h.b16 %v732
    %v810 = vunpack.c.l.b16 %v733
    %v811 = vunpack.c.h.b16 %v733
    %v812 = vunpack.c.l.b16 %v734
    %v813 = vunpack.c.h.b16 %v734
    %v814 = vunpack.c.l.b16 %v735
    %v815 = vunpack.c.h.b16 %v735
    %v816 = vunpack.c.l.b16 %v736
    %v817 = vunpack.c.h.b16 %v736
    %v818 = vunpack.c.l.b16 %v737
    %v819 = vunpack.c.h.b16 %v737
    %v820 = vunpack.c.l.b16 %v738
    %v821 = vunpack.c.h.b16 %v738
    %v822 = vunpack.c.l.b16 %v739
    %v823 = vunpack.c.h.b16 %v739
    %v824 = vunpack.c.l.b16 %v740
    %v825 = vunpack.c.h.b16 %v740
    %v826 = vunpack.c.l.b16 %v741
    %v827 = vunpack.c.h.b16 %v741
    %v828 = vunpack.c.l.b16 %v742
    %v829 = vunpack.c.h.b16 %v742
    %v830 = vunpack.c.l.b16 %v743
    %v831 = vunpack.c.h.b16 %v743
    %v832 = vunpack.c.l.b16 %v744
    %v833 = vunpack.c.h.b16 %v744
    %v834 = vunpack.c.l.b16 %v745
    %v835 = vunpack.c.h.b16 %v745
    %v836 = vunpack.c.l.b16 %v746
    %v837 = vunpack.c.h.b16 %v746
    %v838 = vunpack.c.l.b16 %v747
    %v839 = vunpack.c.h.b16 %v747
    %v840 = vunpack.c.l.b16 %v748
    %v841 = vunpack.c.h.b16 %v748
    %v842 = vunpack.c.l.b16 %v749
    %v843 = vunpack.c.h.b16 %v749
    %v844 = vunpack.c.l.b16 %v750
    %v845 = vunpack.c.h.b16 %v750
    %v846 = vunpack.c.l.b16 %v751
    %v847 = vunpack.c.h.b16 %v751
    %v848 = vpack.c.b16 %v788, %v784
    %v849 = vpack.c.b16 %v789, %v785
    %v850 = vpack.c.b16 %v790, %v786
    %v851 = vpack.c.b16 %v791, %v787
    %v852 = vpack.c.b16 %v796, %v792
    %v853 = vpack.c.b16 %v797, %v793
    %v854 = vpack.c.b16 %v798, %v794
    %v855 = vpack.c.b16 %v799, %v795
    %v856 = vpack.c.b16 %v804, %v800
    %v857 = vpack.c.b16 %v805, %v801
    %v858 = vpack.c.b16 %v806, %v802
    %v859 = vpack.c.b16 %v807, %v803
    %v860 = vpack.c.b16 %v812, %v808
    %v861 = vpack.c.b16 %v813, %v809
    %v862 = vpack.c.b16 %v814, %v810
    %v863 = vpack.c.b16 %v815, %v811
    %v864 = vpack.c.b16 %v820, %v816
    %v865 = vpack.c.b16 %v821, %v817
    %v866 = vpack.c.b16 %v822, %v818
    %v867 = vpack.c.b16 %v823, %v819
    %v868 = vpack.c.b16 %v828, %v824
    %v869 = vpack.c.b16 %v829, %v825
    %v870 = vpack.c.b16 %v830, %v826
    %v871 = vpack.c.b16 %v831, %v827
    %v872 = vpack.c.b16 %v836, %v832
    %v873 = vpack.c.b16 %v837, %v833
    %v874 = vpack.c.b16 %v838, %v834
    %v875 = vpack.c.b16 %v839, %v835
    %v876 = vpack.c.b16 %v844, %v840
    %v877 = vpack.c.b16 %v845, %v841
    %v878 = vpack.c.b16 %v846, %v842
    %v879 = vpack.c.b16 %v847, %v843
    %912 = vmatprep.subr.bf16.mxu0 %v877
    %913 = vmatpush1.bf16.msra.mxu0 %v876
    %914 = vmatprep.subr.bf16.mxu0 %v873
    %915 = vmatpush1.bf16.msra.mxu0 %v872
    %916 = vmatprep.subr.bf16.mxu0 %v869
    %917 = vmatpush1.bf16.msra.mxu0 %v868
    %918 = vmatprep.subr.bf16.mxu0 %v865
    %919 = vmatpush1.bf16.msra.mxu0 %v864
    %920 = vmatprep.subr.bf16.mxu0 %v861
    %921 = vmatpush1.bf16.msra.mxu0 %v860
    %922 = vmatprep.subr.bf16.mxu0 %v857
    %923 = vmatpush1.bf16.msra.mxu0 %v856
    %924 = vmatprep.subr.bf16.mxu0 %v853
    %925 = vmatpush1.bf16.msra.mxu0 %v852
    %926 = vmatprep.subr.bf16.mxu0 %v849
    %927 = vmatpush1.bf16.msra.mxu0 %v848
    %928 = vmatprep.subr.bf16.mxu0 0
    %929 = vmatpush2.bf16.msra.mxu0 0
    %930 = vmatprep.subr.bf16.mxu0 0
    %931 = vmatpush2.bf16.msra.mxu0 0
    %932 = vmatprep.subr.bf16.mxu0 0
    %933 = vmatpush2.bf16.msra.mxu0 0
    %934 = vmatprep.subr.bf16.mxu0 0
    %935 = vmatpush2.bf16.msra.mxu0 0
    %936 = vmatprep.subr.bf16.mxu0 0
    %937 = vmatpush2.bf16.msra.mxu0 0
    %938 = vmatprep.subr.bf16.mxu0 0
    %939 = vmatpush2.bf16.msra.mxu0 0
    %940 = vmatprep.subr.bf16.mxu0 0
    %941 = vmatpush2.bf16.msra.mxu0 0
    %942 = vmatprep.subr.bf16.mxu0 0
    %943 = vmatpush2.bf16.msra.mxu0 0
    %944 = vmatprep.mubr.bf16.mxu0 0
    %945 = vmatmul.mubr.bf16.gmra.mxu0 %v719
    %v946 = vpop.f32.mrf.mxu0
    %v947 = vadd.f32 0.0, %v946
    %v948 = vpop.f32.mrf.mxu0
    %v949 = vadd.f32 0.0, %v948
    %v950 = vpop.f32.mrf.mxu0
    %v951 = vadd.f32 0.0, %v950
    %v952 = vpop.f32.mrf.mxu0
    %v953 = vadd.f32 0.0, %v952
    %954 = vdwg.mxu0
    %955 = vmatprep.subr.bf16.mxu0 %v879
    %956 = vmatpush1.bf16.msra.mxu0 %v878
    %957 = vmatprep.subr.bf16.mxu0 %v875
    %958 = vmatpush1.bf16.msra.mxu0 %v874
    %959 = vmatprep.subr.bf16.mxu0 %v871
    %960 = vmatpush1.bf16.msra.mxu0 %v870
    %961 = vmatprep.subr.bf16.mxu0 %v867
    %962 = vmatpush1.bf16.msra.mxu0 %v866
    %963 = vmatprep.subr.bf16.mxu0 %v863
    %964 = vmatpush1.bf16.msra.mxu0 %v862
    %965 = vmatprep.subr.bf16.mxu0 %v859
    %966 = vmatpush1.bf16.msra.mxu0 %v858
    %967 = vmatprep.subr.bf16.mxu0 %v855
    %968 = vmatpush1.bf16.msra.mxu0 %v854
    %969 = vmatprep.subr.bf16.mxu0 %v851
    %970 = vmatpush1.bf16.msra.mxu0 %v850
    %971 = vmatprep.subr.bf16.mxu0 0
    %972 = vmatpush2.bf16.msra.mxu0 0
    %973 = vmatprep.subr.bf16.mxu0 0
    %974 = vmatpush2.bf16.msra.mxu0 0
    %975 = vmatprep.subr.bf16.mxu0 0
    %976 = vmatpush2.bf16.msra.mxu0 0
    %977 = vmatprep.subr.bf16.mxu0 0
    %978 = vmatpush2.bf16.msra.mxu0 0
    %979 = vmatprep.subr.bf16.mxu0 0
    %980 = vmatpush2.bf16.msra.mxu0 0
    %981 = vmatprep.subr.bf16.mxu0 0
    %982 = vmatpush2.bf16.msra.mxu0 0
    %983 = vmatprep.subr.bf16.mxu0 0
    %984 = vmatpush2.bf16.msra.mxu0 0
    %985 = vmatprep.subr.bf16.mxu0 0
    %986 = vmatpush2.bf16.msra.mxu0 0
    %987 = vmatprep.mubr.bf16.mxu0 0
    %988 = vmatmul.mubr.bf16.gmra.mxu0 %v719
    %v989 = vpop.f32.mrf.mxu0
    %v990 = vadd.f32 0.0, %v989
    %v991 = vpop.f32.mrf.mxu0
    %v992 = vadd.f32 0.0, %v991
    %v993 = vpop.f32.mrf.mxu0
    %v994 = vadd.f32 0.0, %v993
    %v995 = vpop.f32.mrf.mxu0
    %v996 = vadd.f32 0.0, %v995
    %997 = vdwg.mxu0
    %v998 = vpack.c.bf16 %v951, %v947
    %v999 = vpack.c.bf16 %v953, %v949
    %v1000 = vpack.c.bf16 %v994, %v990
    %v1001 = vpack.c.bf16 %v996, %v992
    %v1002 = vld [vmem:[%s6] sm:$0xf]
    %v1003 = vld [vmem:[%s6 + $0x4] sm:$0xf]
    %v1004 = vld [vmem:[%s6 + $0x8] sm:$0xf]
    %v1005 = vld [vmem:[%s6 + $0xc] sm:$0xf]
    %v1006 = vld [vmem:[%s6 + $0x10] sm:$0xf]
    %v1007 = vld [vmem:[%s6 + $0x14] sm:$0xf]
    %v1008 = vld [vmem:[%s6 + $0x18] sm:$0xf]
    %v1009 = vld [vmem:[%s6 + $0x1c] sm:$0xf]
    %v1010 = vld [vmem:[%s6 + $0x20] sm:$0xf]
    %v1011 = vld [vmem:[%s6 + $0x24] sm:$0xf]
    %v1012 = vld [vmem:[%s6 + $0x28] sm:$0xf]
    %v1013 = vld [vmem:[%s6 + $0x2c] sm:$0xf]
    %v1014 = vld [vmem:[%s6 + $0x30] sm:$0xf]
    %v1015 = vld [vmem:[%s6 + $0x34] sm:$0xf]
    %v1016 = vld [vmem:[%s6 + $0x38] sm:$0xf]
    %v1017 = vld [vmem:[%s6 + $0x3c] sm:$0xf]
    %v1034 = vunpack.c.l.b16 %v1002
    %v1035 = vunpack.c.l.b16 %v1003
    %v1036 = vunpack.c.l.b16 %v1004
    %v1037 = vunpack.c.l.b16 %v1005
    %v1038 = vunpack.c.l.b16 %v1006
    %v1039 = vunpack.c.l.b16 %v1007
    %v1040 = vunpack.c.l.b16 %v1008
    %v1041 = vunpack.c.l.b16 %v1009
    %v1042 = vunpack.c.l.b16 %v1010
    %v1043 = vunpack.c.l.b16 %v1011
    %v1044 = vunpack.c.l.b16 %v1012
    %v1045 = vunpack.c.l.b16 %v1013
    %v1046 = vunpack.c.l.b16 %v1014
    %v1047 = vunpack.c.l.b16 %v1015
    %v1048 = vunpack.c.l.b16 %v1016
    %v1049 = vunpack.c.l.b16 %v1017
    %v1050 = vpack.c.b16 %v1035, %v1034
    %v1051 = vpack.c.b16 %v1037, %v1036
    %v1052 = vpack.c.b16 %v1039, %v1038
    %v1053 = vpack.c.b16 %v1041, %v1040
    %v1054 = vpack.c.b16 %v1043, %v1042
    %v1055 = vpack.c.b16 %v1045, %v1044
    %v1056 = vpack.c.b16 %v1047, %v1046
    %v1057 = vpack.c.b16 %v1049, %v1048
    %1066 = vmatprep.subr.bf16.mxu0 0
    %1067 = vmatpush1.bf16.msra.mxu0 %v1057
    %1068 = vmatprep.subr.bf16.mxu0 0
    %1069 = vmatpush1.bf16.msra.mxu0 %v1056
    %1070 = vmatprep.subr.bf16.mxu0 0
    %1071 = vmatpush1.bf16.msra.mxu0 %v1055
    %1072 = vmatprep.subr.bf16.mxu0 0
    %1073 = vmatpush1.bf16.msra.mxu0 %v1054
    %1074 = vmatprep.subr.bf16.mxu0 0
    %1075 = vmatpush1.bf16.msra.mxu0 %v1053
    %1076 = vmatprep.subr.bf16.mxu0 0
    %1077 = vmatpush1.bf16.msra.mxu0 %v1052
    %1078 = vmatprep.subr.bf16.mxu0 0
    %1079 = vmatpush1.bf16.msra.mxu0 %v1051
    %1080 = vmatprep.subr.bf16.mxu0 0
    %1081 = vmatpush1.bf16.msra.mxu0 %v1050
    %1082 = vmatprep.subr.bf16.mxu0 0
    %1083 = vmatpush2.bf16.msra.mxu0 0
    %1084 = vmatprep.subr.bf16.mxu0 0
    %1085 = vmatpush2.bf16.msra.mxu0 0
    %1086 = vmatprep.subr.bf16.mxu0 0
    %1087 = vmatpush2.bf16.msra.mxu0 0
    %1088 = vmatprep.subr.bf16.mxu0 0
    %1089 = vmatpush2.bf16.msra.mxu0 0
    %1090 = vmatprep.subr.bf16.mxu0 0
    %1091 = vmatpush2.bf16.msra.mxu0 0
    %1092 = vmatprep.subr.bf16.mxu0 0
    %1093 = vmatpush2.bf16.msra.mxu0 0
    %1094 = vmatprep.subr.bf16.mxu0 0
    %1095 = vmatpush2.bf16.msra.mxu0 0
    %1096 = vmatprep.subr.bf16.mxu0 0
    %1097 = vmatpush2.bf16.msra.mxu0 0
    %1098 = vmatprep.mubr.bf16.mxu0 0
    %1099 = vmatmul.mubr.bf16.gmra.mxu0 %v719
    %v1100 = vpop.f32.mrf.mxu0
    %v1101 = vadd.f32 0.0, %v1100
    %v1102 = vpop.f32.mrf.mxu0
    %v1103 = vpop.f32.mrf.mxu0
    %v1104 = vadd.f32 0.0, %v1103
    %v1105 = vpop.f32.mrf.mxu0
    %1106 = vdwg.mxu0
    %v1108 = vsel %vm241, %v1101, 0
    %v1111 = vsel %vm241, %v1104, 0
    %1113 = vmatprep.subr.mxu0 0.0
    %1114 = vmatpush1.xpose.msra.mxu0 0.0
    %1115 = vmatprep.subr.mxu0 0.0
    %1116 = vmatpush1.xpose.msra.mxu0 0.0
    %1117 = vmatprep.subr.mxu0 0.0
    %1118 = vmatpush1.xpose.msra.mxu0 0.0
    %1119 = vmatprep.subr.mxu0 0.0
    %1120 = vmatpush1.xpose.msra.mxu0 0.0
    %1121 = vmatprep.subr.mxu0 0.0
    %1122 = vmatpush1.xpose.msra.mxu0 0.0
    %1123 = vmatprep.subr.mxu0 0.0
    %1124 = vmatpush1.xpose.msra.mxu0 0.0
    %1125 = vmatprep.subr.mxu0 0.0
    %1126 = vmatpush1.xpose.msra.mxu0 0.0
    %1127 = vmatprep.subr.mxu0 0.0
    %1128 = vmatpush1.xpose.msra.mxu0 0.0
    %1129 = vmatprep.subr.mxu0 0.0
    %1130 = vmatpush1.xpose.msra.mxu0 0.0
    %1131 = vmatprep.subr.mxu0 0.0
    %1132 = vmatpush1.xpose.msra.mxu0 0.0
    %1133 = vmatprep.subr.mxu0 0.0
    %1134 = vmatpush1.xpose.msra.mxu0 0.0
    %1135 = vmatprep.subr.mxu0 0.0
    %1136 = vmatpush1.xpose.msra.mxu0 0.0
    %1137 = vmatprep.subr.mxu0 0.0
    %1138 = vmatpush1.xpose.msra.mxu0 0.0
    %1139 = vmatprep.subr.mxu0 0.0
    %1140 = vmatpush1.xpose.msra.mxu0 0.0
    %1141 = vmatprep.subr.mxu0 0.0
    %1142 = vmatpush1.xpose.msra.mxu0 %v1111
    %1143 = vmatprep.subr.mxu0 0.0
    %1144 = vmatpush1.xpose.msra.mxu0 %v1108
    %1145 = vmatprep.subr.mxu0 0.0
    %1146 = vmatpush2.xpose.msra.mxu0 0.0
    %1147 = vmatprep.subr.mxu0 0.0
    %1148 = vmatpush2.xpose.msra.mxu0 0.0
    %1149 = vmatprep.subr.mxu0 0.0
    %1150 = vmatpush2.xpose.msra.mxu0 0.0
    %1151 = vmatprep.subr.mxu0 0.0
    %1152 = vmatpush2.xpose.msra.mxu0 0.0
    %1153 = vmatprep.subr.mxu0 0.0
    %1154 = vmatpush2.xpose.msra.mxu0 0.0
    %1155 = vmatprep.subr.mxu0 0.0
    %1156 = vmatpush2.xpose.msra.mxu0 0.0
    %1157 = vmatprep.subr.mxu0 0.0
    %1158 = vmatpush2.xpose.msra.mxu0 0.0
    %1159 = vmatprep.subr.mxu0 0.0
    %1160 = vmatpush2.xpose.msra.mxu0 0.0
    %1161 = vmatprep.subr.mxu0 0.0
    %1162 = vmatpush2.xpose.msra.mxu0 0.0
    %1163 = vmatprep.subr.mxu0 0.0
    %1164 = vmatpush2.xpose.msra.mxu0 0.0
    %1165 = vmatprep.subr.mxu0 0.0
    %1166 = vmatpush2.xpose.msra.mxu0 0.0
    %1167 = vmatprep.subr.mxu0 0.0
    %1168 = vmatpush2.xpose.msra.mxu0 0.0
    %1169 = vmatprep.subr.mxu0 0.0
    %1170 = vmatpush2.xpose.msra.mxu0 0.0
    %1171 = vmatprep.subr.mxu0 0.0
    %1172 = vmatpush2.xpose.msra.mxu0 0.0
    %1173 = vmatprep.subr.mxu0 0.0
    %1174 = vmatpush2.xpose.msra.mxu0 0.0
    %1175 = vmatprep.subr.mxu0 0.0
    %1176 = vmatpush2.xpose.msra.mxu0 0.0
    %1177 = vmatprep.mubr.f32.mxu0 0.0
    %1178 = vmatmul.mubr.f32.gmra.mxu0 %v243
    %v1179 = vpop.f32.mrf.mxu0
    %v1180 = vadd.f32 0.0, %v1179
    %v1181 = vpop.f32.mrf.mxu0
    %1182 = vdwg.mxu0
    %1183 = vset.pattern.permute.xlu0 4
    %1184 = vperm.xlu0 %1183, %v1101
    %v1185 = vpop.permute.xlu0 %1184
    %1187 = vset.pattern.permute.xlu0 4
    %1188 = vperm.xlu0 %1187, %v1104
    %v1189 = vpop.permute.xlu0 %1188
    %v1191 = vlaneseq
    %v1192 = vshrl.u32 %v1191, 7
    %v1193 = vsub.s32 0, %v1192
    %v1194 = vrot.slane %v1180, %v1193
    %v1195 = vadd.f32 %v1185, %v1194
    %v1196 = vadd.f32 %v1189, %v1194
    %vm1197 = vcmp.gt.f32.partialorder %v1195, 0.0
    %vm1198 = vcmp.gt.f32.partialorder %v1196, 0.0
    %v1199 = vmul.f32 %v1195, 0.2
    %v1200 = vmul.f32 %v1196, 0.2
    %v1201 = vsel %vm1197, %v1195, %v1199
    %v1202 = vsel %vm1198, %v1196, %v1200
    %v1203 = vadd.f32 %v1201, %v68
    %v1204 = vadd.f32 %v1202, %v69
    %v1205 = vsel %vm343, %v1203, -inf
    %1206 = vmax.xlane.f32.xlu0 %v1205
    %v1207 = vpop.xlane.xlu0 %1206
    %v1208 = vsel %vm347, %v1204, -inf
    %1209 = vmax.xlane.f32.xlu0 %v1208
    %v1210 = vpop.xlane.xlu0 %1209
    %v1211 = vsub.f32 %v1203, %v1207
    %v1212 = vsub.f32 %v1204, %v1210
    %v1213 = vmul.f32 %v1211, 1.442695
    %v1214 = vpow.pop %v1213
    %v1215 = vmul.f32 %v1212, 1.442695
    %v1216 = vpow.pop %v1215
    %v1217 = vsel %vm343, %v1214, 0.0
    %1218 = vadd.xlane.f32.xlu0 %v1217
    %v1219 = vpop.xlane.xlu0 %1218
    %v1220 = vsel %vm347, %v1216, 0.0
    %1221 = vadd.xlane.f32.xlu0 %v1220
    %v1222 = vpop.xlane.xlu0 %1221
    %v1223 = vrcp.pop %v1219
    %v1224 = vrcp.pop %v1222
    %v1225 = vmul.f32 %v1214, %v1223
    %v1226 = vmul.f32 %v1216, %v1224
    %v1227 = vpack.c.bf16 %v1226, %v1225
    %1228 = vset.pattern.permute.xlu0 5
    %1229 = vperm.xlu0 %1228, %v1101
    %v1230 = vpop.permute.xlu0 %1229
    %1232 = vset.pattern.permute.xlu0 5
    %1233 = vperm.xlu0 %1232, %v1104
    %v1234 = vpop.permute.xlu0 %1233
    %v1236 = vlaneseq
    %v1237 = vshrl.u32 %v1236, 7
    %v1238 = vsub.s32 1, %v1237
    %v1239 = vrot.slane %v1180, %v1238
    %v1240 = vadd.f32 %v1230, %v1239
    %v1241 = vadd.f32 %v1234, %v1239
    %vm1242 = vcmp.gt.f32.partialorder %v1240, 0.0
    %vm1243 = vcmp.gt.f32.partialorder %v1241, 0.0
    %v1244 = vmul.f32 %v1240, 0.2
    %v1245 = vmul.f32 %v1241, 0.2
    %v1246 = vsel %vm1242, %v1240, %v1244
    %v1247 = vsel %vm1243, %v1241, %v1245
    %v1248 = vadd.f32 %v1246, %v68
    %v1249 = vadd.f32 %v1247, %v69
    %v1250 = vsel %vm343, %v1248, -inf
    %1251 = vmax.xlane.f32.xlu0 %v1250
    %v1252 = vpop.xlane.xlu0 %1251
    %v1253 = vsel %vm347, %v1249, -inf
    %1254 = vmax.xlane.f32.xlu0 %v1253
    %v1255 = vpop.xlane.xlu0 %1254
    %v1256 = vsub.f32 %v1248, %v1252
    %v1257 = vsub.f32 %v1249, %v1255
    %v1258 = vmul.f32 %v1256, 1.442695
    %v1259 = vpow.pop %v1258
    %v1260 = vmul.f32 %v1257, 1.442695
    %v1261 = vpow.pop %v1260
    %v1262 = vsel %vm343, %v1259, 0.0
    %1263 = vadd.xlane.f32.xlu0 %v1262
    %v1264 = vpop.xlane.xlu0 %1263
    %v1265 = vsel %vm347, %v1261, 0.0
    %1266 = vadd.xlane.f32.xlu0 %v1265
    %v1267 = vpop.xlane.xlu0 %1266
    %v1268 = vrcp.pop %v1264
    %v1269 = vrcp.pop %v1267
    %v1270 = vmul.f32 %v1259, %v1268
    %v1271 = vmul.f32 %v1261, %v1269
    %v1272 = vpack.c.bf16 %v1271, %v1270
    %v1274 = vsel %vm343, %v1272, 0
    %v1277 = vsel %vm416, %v999, 0
    %1279 = vmatprep.subr.bf16.mxu0 0
    %1280 = vmatpush1.bf16.msra.mxu0 0
    %1281 = vmatprep.subr.bf16.mxu0 0
    %1282 = vmatpush1.bf16.msra.mxu0 0
    %1283 = vmatprep.subr.bf16.mxu0 0
    %1284 = vmatpush1.bf16.msra.mxu0 0
    %1285 = vmatprep.subr.bf16.mxu0 0
    %1286 = vmatpush1.bf16.msra.mxu0 0
    %1287 = vmatprep.subr.bf16.mxu0 0
    %1288 = vmatpush1.bf16.msra.mxu0 0
    %1289 = vmatprep.subr.bf16.mxu0 0
    %1290 = vmatpush1.bf16.msra.mxu0 0
    %1291 = vmatprep.subr.bf16.mxu0 0
    %1292 = vmatpush1.bf16.msra.mxu0 0
    %1293 = vmatprep.subr.bf16.mxu0 0
    %1294 = vmatpush1.bf16.msra.mxu0 %v1277
    %1295 = vmatprep.subr.bf16.mxu0 0
    %1296 = vmatpush2.bf16.msra.mxu0 0
    %1297 = vmatprep.subr.bf16.mxu0 0
    %1298 = vmatpush2.bf16.msra.mxu0 0
    %1299 = vmatprep.subr.bf16.mxu0 0
    %1300 = vmatpush2.bf16.msra.mxu0 0
    %1301 = vmatprep.subr.bf16.mxu0 0
    %1302 = vmatpush2.bf16.msra.mxu0 0
    %1303 = vmatprep.subr.bf16.mxu0 0
    %1304 = vmatpush2.bf16.msra.mxu0 0
    %1305 = vmatprep.subr.bf16.mxu0 0
    %1306 = vmatpush2.bf16.msra.mxu0 0
    %1307 = vmatprep.subr.bf16.mxu0 0
    %1308 = vmatpush2.bf16.msra.mxu0 0
    %1309 = vmatprep.subr.bf16.mxu0 0
    %1310 = vmatpush2.bf16.msra.mxu0 0
    %1311 = vmatprep.mubr.bf16.mxu0 0
    %1312 = vmatmul.mubr.bf16.gmra.mxu0 %v1274
    %v1313 = vpop.f32.mrf.mxu0
    %v1314 = vadd.f32 0.0, %v1313
    %v1315 = vpop.f32.mrf.mxu0
    %v1316 = vpop.f32.mrf.mxu0
    %v1317 = vadd.f32 0.0, %v1316
    %v1318 = vpop.f32.mrf.mxu0
    %1319 = vdwg.mxu0
    %v1321 = vsel %vm343, %v1227, 0
    %v1324 = vsel %vm416, %v998, 0
    %1326 = vmatprep.subr.bf16.mxu0 0
    %1327 = vmatpush1.bf16.msra.mxu0 0
    %1328 = vmatprep.subr.bf16.mxu0 0
    %1329 = vmatpush1.bf16.msra.mxu0 0
    %1330 = vmatprep.subr.bf16.mxu0 0
    %1331 = vmatpush1.bf16.msra.mxu0 0
    %1332 = vmatprep.subr.bf16.mxu0 0
    %1333 = vmatpush1.bf16.msra.mxu0 0
    %1334 = vmatprep.subr.bf16.mxu0 0
    %1335 = vmatpush1.bf16.msra.mxu0 0
    %1336 = vmatprep.subr.bf16.mxu0 0
    %1337 = vmatpush1.bf16.msra.mxu0 0
    %1338 = vmatprep.subr.bf16.mxu0 0
    %1339 = vmatpush1.bf16.msra.mxu0 0
    %1340 = vmatprep.subr.bf16.mxu0 0
    %1341 = vmatpush1.bf16.msra.mxu0 %v1324
    %1342 = vmatprep.subr.bf16.mxu0 0
    %1343 = vmatpush2.bf16.msra.mxu0 0
    %1344 = vmatprep.subr.bf16.mxu0 0
    %1345 = vmatpush2.bf16.msra.mxu0 0
    %1346 = vmatprep.subr.bf16.mxu0 0
    %1347 = vmatpush2.bf16.msra.mxu0 0
    %1348 = vmatprep.subr.bf16.mxu0 0
    %1349 = vmatpush2.bf16.msra.mxu0 0
    %1350 = vmatprep.subr.bf16.mxu0 0
    %1351 = vmatpush2.bf16.msra.mxu0 0
    %1352 = vmatprep.subr.bf16.mxu0 0
    %1353 = vmatpush2.bf16.msra.mxu0 0
    %1354 = vmatprep.subr.bf16.mxu0 0
    %1355 = vmatpush2.bf16.msra.mxu0 0
    %1356 = vmatprep.subr.bf16.mxu0 0
    %1357 = vmatpush2.bf16.msra.mxu0 0
    %1358 = vmatprep.mubr.bf16.mxu0 0
    %1359 = vmatmul.mubr.bf16.gmra.mxu0 %v1321
    %v1360 = vpop.f32.mrf.mxu0
    %v1361 = vadd.f32 %v1314, %v1360
    %v1362 = vpop.f32.mrf.mxu0
    %v1363 = vpop.f32.mrf.mxu0
    %v1364 = vadd.f32 %v1317, %v1363
    %v1365 = vpop.f32.mrf.mxu0
    %1366 = vdwg.mxu0
    %1367 = vset.pattern.permute.xlu0 6
    %1368 = vperm.xlu0 %1367, %v1101
    %v1369 = vpop.permute.xlu0 %1368
    %1371 = vset.pattern.permute.xlu0 6
    %1372 = vperm.xlu0 %1371, %v1104
    %v1373 = vpop.permute.xlu0 %1372
    %v1375 = vlaneseq
    %v1376 = vshrl.u32 %v1375, 7
    %v1377 = vsub.s32 2, %v1376
    %v1378 = vrot.slane %v1180, %v1377
    %v1379 = vadd.f32 %v1369, %v1378
    %v1380 = vadd.f32 %v1373, %v1378
    %vm1381 = vcmp.gt.f32.partialorder %v1379, 0.0
    %vm1382 = vcmp.gt.f32.partialorder %v1380, 0.0
    %v1383 = vmul.f32 %v1379, 0.2
    %v1384 = vmul.f32 %v1380, 0.2
    %v1385 = vsel %vm1381, %v1379, %v1383
    %v1386 = vsel %vm1382, %v1380, %v1384
    %v1387 = vadd.f32 %v1385, %v68
    %v1388 = vadd.f32 %v1386, %v69
    %v1389 = vsel %vm343, %v1387, -inf
    %1390 = vmax.xlane.f32.xlu0 %v1389
    %v1391 = vpop.xlane.xlu0 %1390
    %v1392 = vsel %vm347, %v1388, -inf
    %1393 = vmax.xlane.f32.xlu0 %v1392
    %v1394 = vpop.xlane.xlu0 %1393
    %v1395 = vsub.f32 %v1387, %v1391
    %v1396 = vsub.f32 %v1388, %v1394
    %v1397 = vmul.f32 %v1395, 1.442695
    %v1398 = vpow.pop %v1397
    %v1399 = vmul.f32 %v1396, 1.442695
    %v1400 = vpow.pop %v1399
    %v1401 = vsel %vm343, %v1398, 0.0
    %1402 = vadd.xlane.f32.xlu0 %v1401
    %v1403 = vpop.xlane.xlu0 %1402
    %v1404 = vsel %vm347, %v1400, 0.0
    %1405 = vadd.xlane.f32.xlu0 %v1404
    %v1406 = vpop.xlane.xlu0 %1405
    %v1407 = vrcp.pop %v1403
    %v1408 = vrcp.pop %v1406
    %v1409 = vmul.f32 %v1398, %v1407
    %v1410 = vmul.f32 %v1400, %v1408
    %v1411 = vpack.c.bf16 %v1410, %v1409
    %v1413 = vsel %vm343, %v1411, 0
    %v1416 = vsel %vm416, %v1000, 0
    %1418 = vmatprep.subr.bf16.mxu0 0
    %1419 = vmatpush1.bf16.msra.mxu0 0
    %1420 = vmatprep.subr.bf16.mxu0 0
    %1421 = vmatpush1.bf16.msra.mxu0 0
    %1422 = vmatprep.subr.bf16.mxu0 0
    %1423 = vmatpush1.bf16.msra.mxu0 0
    %1424 = vmatprep.subr.bf16.mxu0 0
    %1425 = vmatpush1.bf16.msra.mxu0 0
    %1426 = vmatprep.subr.bf16.mxu0 0
    %1427 = vmatpush1.bf16.msra.mxu0 0
    %1428 = vmatprep.subr.bf16.mxu0 0
    %1429 = vmatpush1.bf16.msra.mxu0 0
    %1430 = vmatprep.subr.bf16.mxu0 0
    %1431 = vmatpush1.bf16.msra.mxu0 0
    %1432 = vmatprep.subr.bf16.mxu0 0
    %1433 = vmatpush1.bf16.msra.mxu0 %v1416
    %1434 = vmatprep.subr.bf16.mxu0 0
    %1435 = vmatpush2.bf16.msra.mxu0 0
    %1436 = vmatprep.subr.bf16.mxu0 0
    %1437 = vmatpush2.bf16.msra.mxu0 0
    %1438 = vmatprep.subr.bf16.mxu0 0
    %1439 = vmatpush2.bf16.msra.mxu0 0
    %1440 = vmatprep.subr.bf16.mxu0 0
    %1441 = vmatpush2.bf16.msra.mxu0 0
    %1442 = vmatprep.subr.bf16.mxu0 0
    %1443 = vmatpush2.bf16.msra.mxu0 0
    %1444 = vmatprep.subr.bf16.mxu0 0
    %1445 = vmatpush2.bf16.msra.mxu0 0
    %1446 = vmatprep.subr.bf16.mxu0 0
    %1447 = vmatpush2.bf16.msra.mxu0 0
    %1448 = vmatprep.subr.bf16.mxu0 0
    %1449 = vmatpush2.bf16.msra.mxu0 0
    %1450 = vmatprep.mubr.bf16.mxu0 0
    %1451 = vmatmul.mubr.bf16.gmra.mxu0 %v1413
    %v1452 = vpop.f32.mrf.mxu0
    %v1453 = vadd.f32 0.0, %v1452
    %v1454 = vpop.f32.mrf.mxu0
    %v1455 = vpop.f32.mrf.mxu0
    %v1456 = vadd.f32 0.0, %v1455
    %v1457 = vpop.f32.mrf.mxu0
    %1458 = vdwg.mxu0
    %v1459 = vadd.f32 %v1361, %v1453
    %v1460 = vadd.f32 %v1364, %v1456
    %1461 = vset.pattern.permute.xlu0 7
    %1462 = vperm.xlu0 %1461, %v1101
    %v1463 = vpop.permute.xlu0 %1462
    %1465 = vset.pattern.permute.xlu0 7
    %1466 = vperm.xlu0 %1465, %v1104
    %v1467 = vpop.permute.xlu0 %1466
    %v1469 = vlaneseq
    %v1470 = vshrl.u32 %v1469, 7
    %v1471 = vsub.s32 3, %v1470
    %v1472 = vrot.slane %v1180, %v1471
    %v1473 = vadd.f32 %v1463, %v1472
    %v1474 = vadd.f32 %v1467, %v1472
    %vm1475 = vcmp.gt.f32.partialorder %v1473, 0.0
    %vm1476 = vcmp.gt.f32.partialorder %v1474, 0.0
    %v1477 = vmul.f32 %v1473, 0.2
    %v1478 = vmul.f32 %v1474, 0.2
    %v1479 = vsel %vm1475, %v1473, %v1477
    %v1480 = vsel %vm1476, %v1474, %v1478
    %v1481 = vadd.f32 %v1479, %v68
    %v1482 = vadd.f32 %v1480, %v69
    %v1483 = vsel %vm343, %v1481, -inf
    %1484 = vmax.xlane.f32.xlu0 %v1483
    %v1485 = vpop.xlane.xlu0 %1484
    %v1486 = vsel %vm347, %v1482, -inf
    %1487 = vmax.xlane.f32.xlu0 %v1486
    %v1488 = vpop.xlane.xlu0 %1487
    %v1489 = vsub.f32 %v1481, %v1485
    %v1490 = vsub.f32 %v1482, %v1488
    %v1491 = vmul.f32 %v1489, 1.442695
    %v1492 = vpow.pop %v1491
    %v1493 = vmul.f32 %v1490, 1.442695
    %v1494 = vpow.pop %v1493
    %v1495 = vsel %vm343, %v1492, 0.0
    %1496 = vadd.xlane.f32.xlu0 %v1495
    %v1497 = vpop.xlane.xlu0 %1496
    %v1498 = vsel %vm347, %v1494, 0.0
    %1499 = vadd.xlane.f32.xlu0 %v1498
    %v1500 = vpop.xlane.xlu0 %1499
    %v1501 = vrcp.pop %v1497
    %v1502 = vrcp.pop %v1500
    %v1503 = vmul.f32 %v1492, %v1501
    %v1504 = vmul.f32 %v1494, %v1502
    %v1505 = vpack.c.bf16 %v1504, %v1503
    %v1507 = vsel %vm343, %v1505, 0
    %v1510 = vsel %vm416, %v1001, 0
    %1512 = vmatprep.subr.bf16.mxu0 0
    %1513 = vmatpush1.bf16.msra.mxu0 0
    %1514 = vmatprep.subr.bf16.mxu0 0
    %1515 = vmatpush1.bf16.msra.mxu0 0
    %1516 = vmatprep.subr.bf16.mxu0 0
    %1517 = vmatpush1.bf16.msra.mxu0 0
    %1518 = vmatprep.subr.bf16.mxu0 0
    %1519 = vmatpush1.bf16.msra.mxu0 0
    %1520 = vmatprep.subr.bf16.mxu0 0
    %1521 = vmatpush1.bf16.msra.mxu0 0
    %1522 = vmatprep.subr.bf16.mxu0 0
    %1523 = vmatpush1.bf16.msra.mxu0 0
    %1524 = vmatprep.subr.bf16.mxu0 0
    %1525 = vmatpush1.bf16.msra.mxu0 0
    %1526 = vmatprep.subr.bf16.mxu0 0
    %1527 = vmatpush1.bf16.msra.mxu0 %v1510
    %1528 = vmatprep.subr.bf16.mxu0 0
    %1529 = vmatpush2.bf16.msra.mxu0 0
    %1530 = vmatprep.subr.bf16.mxu0 0
    %1531 = vmatpush2.bf16.msra.mxu0 0
    %1532 = vmatprep.subr.bf16.mxu0 0
    %1533 = vmatpush2.bf16.msra.mxu0 0
    %1534 = vmatprep.subr.bf16.mxu0 0
    %1535 = vmatpush2.bf16.msra.mxu0 0
    %1536 = vmatprep.subr.bf16.mxu0 0
    %1537 = vmatpush2.bf16.msra.mxu0 0
    %1538 = vmatprep.subr.bf16.mxu0 0
    %1539 = vmatpush2.bf16.msra.mxu0 0
    %1540 = vmatprep.subr.bf16.mxu0 0
    %1541 = vmatpush2.bf16.msra.mxu0 0
    %1542 = vmatprep.subr.bf16.mxu0 0
    %1543 = vmatpush2.bf16.msra.mxu0 0
    %1544 = vmatprep.mubr.bf16.mxu0 0
    %1545 = vmatmul.mubr.bf16.gmra.mxu0 %v1507
    %v1546 = vpop.f32.mrf.mxu0
    %v1547 = vadd.f32 0.0, %v1546
    %v1548 = vpop.f32.mrf.mxu0
    %v1549 = vpop.f32.mrf.mxu0
    %v1550 = vadd.f32 0.0, %v1549
    %v1551 = vpop.f32.mrf.mxu0
    %1552 = vdwg.mxu0
    %v1553 = vadd.f32 %v1459, %v1547
    %v1554 = vadd.f32 %v1460, %v1550
    %v1555 = vmul.f32 %v1553, 0.25
    %v1556 = vmul.f32 %v1554, 0.25
    %v1557 = vld [vmem:[%s7] sm:$0x1]
    %v1559 = vlaneseq
    %v1560 = vshrl.u32 %v1559, 7
    %v1561 = vsub.s32 0, %v1560
    %v1562 = vrot.slane %v1557, %v1561
    %v1564 = vadd.f32 %v1555, %v1562
    %v1565 = vadd.f32 %v1556, %v1562
    %v1566 = vpack.c.bf16 %v1565, %v1564
    %v1567 = vld [vmem:[%s8] sm:$0xff]
    %v1568 = vld [vmem:[%s8 + $0x8] sm:$0xff]
    %v1569 = vld [vmem:[%s8 + $0x10] sm:$0xff]
    %v1570 = vld [vmem:[%s8 + $0x18] sm:$0xff]
    %v1571 = vld [vmem:[%s8 + $0x20] sm:$0xff]
    %v1572 = vld [vmem:[%s8 + $0x28] sm:$0xff]
    %v1573 = vld [vmem:[%s8 + $0x30] sm:$0xff]
    %v1574 = vld [vmem:[%s8 + $0x38] sm:$0xff]
    %v1575 = vld [vmem:[%s8 + $0x40] sm:$0xff]
    %v1576 = vld [vmem:[%s8 + $0x48] sm:$0xff]
    %v1577 = vld [vmem:[%s8 + $0x50] sm:$0xff]
    %v1578 = vld [vmem:[%s8 + $0x58] sm:$0xff]
    %v1579 = vld [vmem:[%s8 + $0x60] sm:$0xff]
    %v1580 = vld [vmem:[%s8 + $0x68] sm:$0xff]
    %v1581 = vld [vmem:[%s8 + $0x70] sm:$0xff]
    %v1582 = vld [vmem:[%s8 + $0x78] sm:$0xff]
    %v1583 = vld [vmem:[%s9] sm:$0x3]
    %v1585 = vlaneseq
    %v1586 = vshrl.u32 %v1585, 7
    %v1587 = vsub.s32 0, %v1586
    %v1588 = vrot.slane %v1583, %v1587
    %v1589 = vlaneseq
    %v1590 = vshrl.u32 %v1589, 7
    %v1591 = vsub.s32 1, %v1590
    %v1592 = vrot.slane %v1583, %v1591
    %v1611 = vunpack.c.l.b16 %v1567
    %v1612 = vunpack.c.h.b16 %v1567
    %v1613 = vunpack.c.l.b16 %v1568
    %v1614 = vunpack.c.h.b16 %v1568
    %v1615 = vunpack.c.l.b16 %v1569
    %v1616 = vunpack.c.h.b16 %v1569
    %v1617 = vunpack.c.l.b16 %v1570
    %v1618 = vunpack.c.h.b16 %v1570
    %v1619 = vunpack.c.l.b16 %v1571
    %v1620 = vunpack.c.h.b16 %v1571
    %v1621 = vunpack.c.l.b16 %v1572
    %v1622 = vunpack.c.h.b16 %v1572
    %v1623 = vunpack.c.l.b16 %v1573
    %v1624 = vunpack.c.h.b16 %v1573
    %v1625 = vunpack.c.l.b16 %v1574
    %v1626 = vunpack.c.h.b16 %v1574
    %v1627 = vunpack.c.l.b16 %v1575
    %v1628 = vunpack.c.h.b16 %v1575
    %v1629 = vunpack.c.l.b16 %v1576
    %v1630 = vunpack.c.h.b16 %v1576
    %v1631 = vunpack.c.l.b16 %v1577
    %v1632 = vunpack.c.h.b16 %v1577
    %v1633 = vunpack.c.l.b16 %v1578
    %v1634 = vunpack.c.h.b16 %v1578
    %v1635 = vunpack.c.l.b16 %v1579
    %v1636 = vunpack.c.h.b16 %v1579
    %v1637 = vunpack.c.l.b16 %v1580
    %v1638 = vunpack.c.h.b16 %v1580
    %v1639 = vunpack.c.l.b16 %v1581
    %v1640 = vunpack.c.h.b16 %v1581
    %v1641 = vunpack.c.l.b16 %v1582
    %v1642 = vunpack.c.h.b16 %v1582
    %v1643 = vpack.c.b16 %v1613, %v1611
    %v1644 = vpack.c.b16 %v1614, %v1612
    %v1645 = vpack.c.b16 %v1617, %v1615
    %v1646 = vpack.c.b16 %v1618, %v1616
    %v1647 = vpack.c.b16 %v1621, %v1619
    %v1648 = vpack.c.b16 %v1622, %v1620
    %v1649 = vpack.c.b16 %v1625, %v1623
    %v1650 = vpack.c.b16 %v1626, %v1624
    %v1651 = vpack.c.b16 %v1629, %v1627
    %v1652 = vpack.c.b16 %v1630, %v1628
    %v1653 = vpack.c.b16 %v1633, %v1631
    %v1654 = vpack.c.b16 %v1634, %v1632
    %v1655 = vpack.c.b16 %v1637, %v1635
    %v1656 = vpack.c.b16 %v1638, %v1636
    %v1657 = vpack.c.b16 %v1641, %v1639
    %v1658 = vpack.c.b16 %v1642, %v1640
    %1675 = vmatprep.subr.bf16.mxu0 %v1658
    %1676 = vmatpush1.bf16.msra.mxu0 %v1657
    %1677 = vmatprep.subr.bf16.mxu0 %v1656
    %1678 = vmatpush1.bf16.msra.mxu0 %v1655
    %1679 = vmatprep.subr.bf16.mxu0 %v1654
    %1680 = vmatpush1.bf16.msra.mxu0 %v1653
    %1681 = vmatprep.subr.bf16.mxu0 %v1652
    %1682 = vmatpush1.bf16.msra.mxu0 %v1651
    %1683 = vmatprep.subr.bf16.mxu0 %v1650
    %1684 = vmatpush1.bf16.msra.mxu0 %v1649
    %1685 = vmatprep.subr.bf16.mxu0 %v1648
    %1686 = vmatpush1.bf16.msra.mxu0 %v1647
    %1687 = vmatprep.subr.bf16.mxu0 %v1646
    %1688 = vmatpush1.bf16.msra.mxu0 %v1645
    %1689 = vmatprep.subr.bf16.mxu0 %v1644
    %1690 = vmatpush1.bf16.msra.mxu0 %v1643
    %1691 = vmatprep.subr.bf16.mxu0 0
    %1692 = vmatpush2.bf16.msra.mxu0 0
    %1693 = vmatprep.subr.bf16.mxu0 0
    %1694 = vmatpush2.bf16.msra.mxu0 0
    %1695 = vmatprep.subr.bf16.mxu0 0
    %1696 = vmatpush2.bf16.msra.mxu0 0
    %1697 = vmatprep.subr.bf16.mxu0 0
    %1698 = vmatpush2.bf16.msra.mxu0 0
    %1699 = vmatprep.subr.bf16.mxu0 0
    %1700 = vmatpush2.bf16.msra.mxu0 0
    %1701 = vmatprep.subr.bf16.mxu0 0
    %1702 = vmatpush2.bf16.msra.mxu0 0
    %1703 = vmatprep.subr.bf16.mxu0 0
    %1704 = vmatpush2.bf16.msra.mxu0 0
    %1705 = vmatprep.subr.bf16.mxu0 0
    %1706 = vmatpush2.bf16.msra.mxu0 0
    %1707 = vmatprep.mubr.bf16.mxu0 0
    %1708 = vmatmul.mubr.bf16.gmra.mxu0 %v1566
    %v1709 = vpop.f32.mrf.mxu0
    %v1710 = vadd.f32 %v1588, %v1709
    %v1711 = vpop.f32.mrf.mxu0
    %v1712 = vadd.f32 %v1592, %v1711
    %v1713 = vpop.f32.mrf.mxu0
    %v1714 = vadd.f32 %v1588, %v1713
    %v1715 = vpop.f32.mrf.mxu0
    %v1716 = vadd.f32 %v1592, %v1715
    %1717 = vdwg.mxu0
    %v1718 = vmax.f32 %v1710, 0.0
    %v1719 = vmax.f32 %v1712, 0.0
    %v1720 = vmax.f32 %v1714, 0.0
    %v1721 = vmax.f32 %v1716, 0.0
    %v1722 = vpack.c.bf16 %v1720, %v1718
    %v1723 = vpack.c.bf16 %v1721, %v1719
    %v1724 = vld [vmem:[#allocation2] sm:$0xf]
    %v1725 = vld [vmem:[#allocation2 + $0x4] sm:$0xf]
    %v1726 = vld [vmem:[#allocation2 + $0x8] sm:$0xf]
    %v1727 = vld [vmem:[#allocation2 + $0xc] sm:$0xf]
    %v1728 = vld [vmem:[#allocation2 + $0x10] sm:$0xf]
    %v1729 = vld [vmem:[#allocation2 + $0x14] sm:$0xf]
    %v1730 = vld [vmem:[#allocation2 + $0x18] sm:$0xf]
    %v1731 = vld [vmem:[#allocation2 + $0x1c] sm:$0xf]
    %v1732 = vld [vmem:[#allocation2 + $0x20] sm:$0xf]
    %v1733 = vld [vmem:[#allocation2 + $0x24] sm:$0xf]
    %v1734 = vld [vmem:[#allocation2 + $0x28] sm:$0xf]
    %v1735 = vld [vmem:[#allocation2 + $0x2c] sm:$0xf]
    %v1736 = vld [vmem:[#allocation2 + $0x30] sm:$0xf]
    %v1737 = vld [vmem:[#allocation2 + $0x34] sm:$0xf]
    %v1738 = vld [vmem:[#allocation2 + $0x38] sm:$0xf]
    %v1739 = vld [vmem:[#allocation2 + $0x3c] sm:$0xf]
    %v1740 = vld [vmem:[#allocation2 + $0x40] sm:$0xf]
    %v1741 = vld [vmem:[#allocation2 + $0x44] sm:$0xf]
    %v1742 = vld [vmem:[#allocation2 + $0x48] sm:$0xf]
    %v1743 = vld [vmem:[#allocation2 + $0x4c] sm:$0xf]
    %v1744 = vld [vmem:[#allocation2 + $0x50] sm:$0xf]
    %v1745 = vld [vmem:[#allocation2 + $0x54] sm:$0xf]
    %v1746 = vld [vmem:[#allocation2 + $0x58] sm:$0xf]
    %v1747 = vld [vmem:[#allocation2 + $0x5c] sm:$0xf]
    %v1748 = vld [vmem:[%s11] sm:$0x1]
    %v1750 = vlaneseq
    %v1751 = vshrl.u32 %v1750, 7
    %v1752 = vsub.s32 0, %v1751
    %v1753 = vrot.slane %v1748, %v1752
    %v1779 = vunpack.c.l.b16 %v1724
    %v1780 = vunpack.c.l.b16 %v1725
    %v1781 = vunpack.c.l.b16 %v1726
    %v1782 = vunpack.c.l.b16 %v1727
    %v1783 = vunpack.c.l.b16 %v1728
    %v1784 = vunpack.c.l.b16 %v1729
    %v1785 = vunpack.c.l.b16 %v1730
    %v1786 = vunpack.c.l.b16 %v1731
    %v1787 = vunpack.c.l.b16 %v1732
    %v1788 = vunpack.c.l.b16 %v1733
    %v1789 = vunpack.c.l.b16 %v1734
    %v1790 = vunpack.c.l.b16 %v1735
    %v1791 = vunpack.c.l.b16 %v1736
    %v1792 = vunpack.c.l.b16 %v1737
    %v1793 = vunpack.c.l.b16 %v1738
    %v1794 = vunpack.c.l.b16 %v1739
    %v1795 = vunpack.c.l.b16 %v1740
    %v1796 = vunpack.c.l.b16 %v1741
    %v1797 = vunpack.c.l.b16 %v1742
    %v1798 = vunpack.c.l.b16 %v1743
    %v1799 = vunpack.c.l.b16 %v1744
    %v1800 = vunpack.c.l.b16 %v1745
    %v1801 = vunpack.c.l.b16 %v1746
    %v1802 = vunpack.c.l.b16 %v1747
    %v1803 = vpack.c.b16 %v1780, %v1779
    %v1804 = vpack.c.b16 %v1782, %v1781
    %v1805 = vpack.c.b16 %v1784, %v1783
    %v1806 = vpack.c.b16 %v1786, %v1785
    %v1807 = vpack.c.b16 %v1788, %v1787
    %v1808 = vpack.c.b16 %v1790, %v1789
    %v1809 = vpack.c.b16 %v1792, %v1791
    %v1810 = vpack.c.b16 %v1794, %v1793
    %v1811 = vpack.c.b16 %v1796, %v1795
    %v1812 = vpack.c.b16 %v1798, %v1797
    %v1813 = vpack.c.b16 %v1800, %v1799
    %v1814 = vpack.c.b16 %v1802, %v1801
    %vm1827 = vcmask 523264
    %v1829 = vsel %vm1827, %v1723, 0
    %1831 = vmatprep.subr.bf16.mxu0 0
    %1832 = vmatpush1.bf16.msra.mxu0 %v1810
    %1833 = vmatprep.subr.bf16.mxu0 0
    %1834 = vmatpush1.bf16.msra.mxu0 %v1809
    %1835 = vmatprep.subr.bf16.mxu0 0
    %1836 = vmatpush1.bf16.msra.mxu0 %v1808
    %1837 = vmatprep.subr.bf16.mxu0 0
    %1838 = vmatpush1.bf16.msra.mxu0 %v1807
    %1839 = vmatprep.subr.bf16.mxu0 0
    %1840 = vmatpush1.bf16.msra.mxu0 %v1806
    %1841 = vmatprep.subr.bf16.mxu0 0
    %1842 = vmatpush1.bf16.msra.mxu0 %v1805
    %1843 = vmatprep.subr.bf16.mxu0 0
    %1844 = vmatpush1.bf16.msra.mxu0 %v1804
    %1845 = vmatprep.subr.bf16.mxu0 0
    %1846 = vmatpush1.bf16.msra.mxu0 %v1803
    %1847 = vmatprep.subr.bf16.mxu0 0
    %1848 = vmatpush2.bf16.msra.mxu0 0
    %1849 = vmatprep.subr.bf16.mxu0 0
    %1850 = vmatpush2.bf16.msra.mxu0 0
    %1851 = vmatprep.subr.bf16.mxu0 0
    %1852 = vmatpush2.bf16.msra.mxu0 0
    %1853 = vmatprep.subr.bf16.mxu0 0
    %1854 = vmatpush2.bf16.msra.mxu0 0
    %1855 = vmatprep.subr.bf16.mxu0 0
    %1856 = vmatpush2.bf16.msra.mxu0 %v1814
    %1857 = vmatprep.subr.bf16.mxu0 0
    %1858 = vmatpush2.bf16.msra.mxu0 %v1813
    %1859 = vmatprep.subr.bf16.mxu0 0
    %1860 = vmatpush2.bf16.msra.mxu0 %v1812
    %1861 = vmatprep.subr.bf16.mxu0 0
    %1862 = vmatpush2.bf16.msra.mxu0 %v1811
    %1863 = vmatprep.mubr.bf16.mxu0 %v1829
    %1864 = vmatmul.mubr.bf16.gmra.mxu0 %v1722
    %v1865 = vpop.f32.mrf.mxu0
    %v1866 = vadd.f32 %v1753, %v1865
    %v1867 = vpop.f32.mrf.mxu0
    %v1868 = vpop.f32.mrf.mxu0
    %v1869 = vadd.f32 %v1753, %v1868
    %v1870 = vpop.f32.mrf.mxu0
    %1871 = vdwg.mxu0
    %1872 = vst [vmem:[#allocation5] sm:$0xff] %v1866
    %1873 = vst [vmem:[#allocation5 + $0x8] sm:$0xf] %v1869
    // Predicated region
    $region54: #{tpu_custom_call.1} parent=1 // pred_check
      _
    $region55: #{tpu_custom_call.1} parent=1 // pred_check_branch
      %1875 = sbr.rel (0) target = $region57
    $region56: #{tpu_custom_call.1} parent=1 // pred_region
      %s1877 = ssub.s32 256, 256
      %1878 = vsyncadd [#allocation4], %s1877
      %s1879 = sshll.u32 [#allocation5], 4
      %s1880 = int_to_ptr.vmem [resolvable:$true] %s1879
      %1885 = dma.vmem_to_hbm [thread:$0]  %s1880, 256, %s12, [#allocation4], 128, 128, 8
    $region57: #{tpu_custom_call.1} parent=1 // pred_fallthru
      _
    // Predicated region
    $region58: #{tpu_custom_call.1} parent=1 // pred_check
      _
    $region59: #{tpu_custom_call.1} parent=1 // pred_check_branch
      %1887 = sbr.rel (0) target = $region61
    $region60: #{tpu_custom_call.1} parent=1 // pred_region
      %1888 = dma.done [#allocation4], 256
    $region61: #{tpu_custom_call.1} parent=1 // pred_fallthru
      _
    %1889 = vsyncpa [#allocation3], 1
    %1890 = vsyncpa [#allocation4], 1

</llo_original>
